<compile_context>
chip_gen: v7x
topology: tpu7x:2x2x1
jax: 0.10.0
libtpu: 0.0.40
codegen_flags: <defaults>
</compile_context>

<pallas_src>
import jax
import jax.numpy as jnp
from jax import lax
from jax.experimental import pallas as pl
from jax.experimental.pallas import tpu as pltpu

# Small hyperparameters consistent with the module (module defaults are 256/256).
NUM_WORDS = 64
EMBEDDING_DIM = 32
HIDDEN_SIZE = 32
LAYERS_NUM = 2
SEQ_LEN = 8
NEG_SLOPE = 0.01          # F.leaky_relu default negative_slope
V_PAD = 128               # lane-dense padded vocab width

H2 = 2 * HIDDEN_SIZE      # packed hidden width (both layers)
G8 = 8 * HIDDEN_SIZE      # fused gates width (both layers, 4 gates each)

# ---- packed parameter blob layout (all row offsets 8-aligned) ---------------
ROW_WFUSED = 0                         # (2H, 8H) fused recurrent weight
ROW_PTABLE = ROW_WFUSED + H2           # (V , 8H) embedding @ w_ih0 (interleaved)
ROW_FCW = ROW_PTABLE + NUM_WORDS       # (2H, V_PAD) fc weight (h0 lanes zeroed)
ROW_BIAS = ROW_FCW + H2                # (1 , 8H) combined LSTM biases
ROW_FCB = ROW_BIAS + 8                 # (1 , V_PAD) fc bias (-1e30 pads)
BLOB_ROWS = ROW_FCB + 8


def poetry_kernel(tok_ref, blob_ref, state_ref, logp_ref, hc_ref, seq_ref):
    T = logp_ref.shape[0]
    H = HIDDEN_SIZE
    V = NUM_WORDS

    # ---- one-time views of the packed parameter blob (single input DMA) ----
    w_fused = blob_ref[ROW_WFUSED:ROW_WFUSED + H2, :]          # (2H, 8H)
    ptable = blob_ref[ROW_PTABLE:ROW_PTABLE + V, :]            # (V , 8H)
    fcw = blob_ref[ROW_FCW:ROW_FCW + H2, 0:V_PAD]              # (2H, V_PAD)
    bias = blob_ref[ROW_BIAS:ROW_BIAS + 1, :]                  # (1 , 8H)
    fcb = blob_ref[ROW_FCB:ROW_FCB + 1, 0:V_PAD]               # (1 , V_PAD)

    # ---- fused embedding lookup + layer-0 input projection ------------------
    # One full-vreg compare builds the one-hot; row T carries token -1 so it is
    # all-zero and its projection is just the bias row (used by the pipeline
    # drain step, whose layer-0 half is masked out anyway).
    lane_v = lax.broadcasted_iota(jnp.int32, (T + 1, V), 1)
    onehot = (lane_v == tok_ref[...]).astype(jnp.float32)      # (T+1, V)
    xproj = jnp.dot(onehot, ptable,
                    preferred_element_type=jnp.float32) + bias  # (T+1, 8H)

    l0_mask = lax.broadcasted_iota(jnp.int32, (1, H2), 1) < H   # layer-0 lanes

    h_comb = state_ref[0:1, :]    # (1, 2H) = [h0 | h1]
    c_comb = state_ref[1:2, :]    # (1, 2H) = [c0 | c1]

    # ---- software-pipelined two-layer LSTM ----------------------------------
    # Pipelined step s runs layer-0 step s and layer-1 step s-1 from ONE
    # (1,2H)@(2H,8H) MXU push.  T+1 serially dependent matmuls total.
    # TODO(synk): w_fused could additionally be pinned in the MXU with
    # pltpu.matmul_push_rhs/acc_lhs/pop; kept as a plain dot for portability.
    for s in range(T + 1):        # static unroll (T is compile-time constant)
        gates = jnp.dot(h_comb, w_fused,
                        preferred_element_type=jnp.float32) + xproj[s:s + 1, :]
        sig = jax.nn.sigmoid(gates)                             # (1, 8H)
        th = jnp.tanh(gates)
        i_c = sig[:, 0:H2]                                      # [i0 | i1]
        f_c = sig[:, H2:2 * H2]                                 # [f0 | f1]
        g_c = th[:, 2 * H2:3 * H2]                              # [g0 | g1]
        o_c = sig[:, 3 * H2:4 * H2]                             # [o0 | o1]
        c_new = f_c * c_comb + i_c * g_c
        h_new = o_c * jnp.tanh(c_new)
        if s == 0:                 # pipeline fill: layer-1 half not started yet
            c_comb = jnp.where(l0_mask, c_new, c_comb)
            h_comb = jnp.where(l0_mask, h_new, h_comb)
        elif s == T:               # pipeline drain: layer-0 half already done
            c_comb = jnp.where(l0_mask, c_comb, c_new)
            h_comb = jnp.where(l0_mask, h_comb, h_new)
        else:
            c_comb = c_new
            h_comb = h_new
        if s >= 1:                 # layer-1 output of step s-1 -> scratch row
            seq_ref[pl.ds(s - 1, 1), :] = h_comb

    # ---- packed final states: single (2, 2H) output DMA ---------------------
    hc_ref[0:1, :] = h_comb        # [h0_final | h1_final]
    hc_ref[1:2, :] = c_comb        # [c0_final | c1_final]

    # ---- fc head + leaky_relu + log_softmax (lane-dense vocab) --------------
    # fcw rows 0:H are zero, so the h0 lanes of the packed buffer contribute
    # nothing; pad bias columns are -1e30 -> exp underflows to 0.
    logits = jnp.dot(seq_ref[...], fcw,
                     preferred_element_type=jnp.float32) + fcb  # (T, V_PAD)
    act = jnp.where(logits >= 0, logits, NEG_SLOPE * logits)
    m = jnp.max(act, axis=-1, keepdims=True)
    shifted = act - m
    lse = jnp.log(jnp.sum(jnp.exp(shifted), axis=-1, keepdims=True))
    logp_ref[...] = shifted - lse


def init_params(key):
    ks = jax.random.split(key, 11)
    bound = 1.0 / jnp.sqrt(jnp.float32(HIDDEN_SIZE))

    def u(k, shape):
        return jax.random.uniform(k, shape, jnp.float32, -bound, bound)

    return {
        "embedding": jax.random.normal(ks[0], (NUM_WORDS, EMBEDDING_DIM), jnp.float32),
        "w_ih0": u(ks[1], (4 * HIDDEN_SIZE, EMBEDDING_DIM)),
        "w_hh0": u(ks[2], (4 * HIDDEN_SIZE, HIDDEN_SIZE)),
        "b_ih0": u(ks[3], (4 * HIDDEN_SIZE,)),
        "b_hh0": u(ks[4], (4 * HIDDEN_SIZE,)),
        "w_ih1": u(ks[5], (4 * HIDDEN_SIZE, HIDDEN_SIZE)),
        "w_hh1": u(ks[6], (4 * HIDDEN_SIZE, HIDDEN_SIZE)),
        "b_ih1": u(ks[7], (4 * HIDDEN_SIZE,)),
        "b_hh1": u(ks[8], (4 * HIDDEN_SIZE,)),
        "fc_w": u(ks[9], (NUM_WORDS, HIDDEN_SIZE)),
        "fc_b": u(ks[10], (NUM_WORDS,)),
    }


def _scatter_gates(w_t, layer):
    """Map a (rows, 4H) PyTorch-gate-ordered [i|f|g|o] matrix into the
    interleaved (rows, 8H) layout [i0 i1 | f0 f1 | g0 g1 | o0 o1]."""
    rows = w_t.shape[0]
    out = jnp.zeros((rows, G8), jnp.float32)
    for k in range(4):
        dst = k * H2 + layer * HIDDEN_SIZE
        out = out.at[:, dst:dst + HIDDEN_SIZE].set(
            w_t[:, k * HIDDEN_SIZE:(k + 1) * HIDDEN_SIZE].astype(jnp.float32))
    return out


def prepare_params(params):
    """One-time layout prep: block-diagonal layer fusion, gate interleave,
    embedding/input-proj fold, vocab padding, and packing into a single blob."""
    H, V = HIDDEN_SIZE, NUM_WORDS

    # Fused recurrent weight (2H, 8H):
    #  rows 0:H  (driven by h0_prev): layer-0 recurrence + layer-1 input proj
    #  rows H:2H (driven by h1_prev): layer-1 recurrence
    top = _scatter_gates(params["w_hh0"].T, 0) + _scatter_gates(params["w_ih1"].T, 1)
    bot = _scatter_gates(params["w_hh1"].T, 1)
    w_fused = jnp.concatenate([top, bot], axis=0)                       # (2H, 8H)

    # Embedding folded into layer-0 input projection -> (V, 8H) lookup table.
    wih0_big = _scatter_gates(params["w_ih0"].T, 0)                     # (E, 8H)
    proj_table = params["embedding"].astype(jnp.float32) @ wih0_big     # (V, 8H)

    bias_big = (_scatter_gates((params["b_ih0"] + params["b_hh0"]).reshape(1, -1), 0)
                + _scatter_gates((params["b_ih1"] + params["b_hh1"]).reshape(1, -1), 1))

    # fc head consumes the packed (T, 2H) buffer: zero the h0 lanes, pad vocab.
    fcw_big = jnp.zeros((H2, V_PAD), jnp.float32)
    fcw_big = fcw_big.at[H:H2, :V].set(params["fc_w"].T.astype(jnp.float32))
    fcb_pad = jnp.full((1, V_PAD), -1e30, jnp.float32)
    fcb_pad = fcb_pad.at[0, :V].set(params["fc_b"].astype(jnp.float32))

    blob = jnp.zeros((BLOB_ROWS, G8), jnp.float32)
    blob = blob.at[ROW_WFUSED:ROW_WFUSED + H2, :].set(w_fused)
    blob = blob.at[ROW_PTABLE:ROW_PTABLE + V, :].set(proj_table)
    blob = blob.at[ROW_FCW:ROW_FCW + H2, 0:V_PAD].set(fcw_big)
    blob = blob.at[ROW_BIAS, :].set(bias_big[0])
    blob = blob.at[ROW_FCB, 0:V_PAD].set(fcb_pad[0])
    return {"blob": blob}


def poetry_creator_forward(x, hidden, prepared):
    """x: int token ids (any shape, viewed as (1,-1)); hidden=(h0,c0), each (L,1,H)."""
    h0, c0 = hidden
    tok = x.reshape(-1).astype(jnp.int32)
    T = tok.shape[0]
    # (T+1, 1) token column; sentinel -1 on the extra pipeline-drain row never
    # matches any lane id, so its one-hot row is all-zero.
    tok_col = jnp.concatenate([tok, jnp.full((1,), -1, jnp.int32)]).reshape(T + 1, 1)
    state = jnp.concatenate(
        [h0.reshape(1, LAYERS_NUM * HIDDEN_SIZE),
         c0.reshape(1, LAYERS_NUM * HIDDEN_SIZE)], axis=0).astype(jnp.float32)

    vmem = pl.BlockSpec(memory_space=pltpu.MemorySpace.VMEM)
    out_shapes = (
        jax.ShapeDtypeStruct((T, V_PAD), jnp.float32),
        jax.ShapeDtypeStruct((2, LAYERS_NUM * HIDDEN_SIZE), jnp.float32),
    )
    grid_spec = pltpu.PrefetchScalarGridSpec(
        num_scalar_prefetch=0,
        grid=(1,),
        in_specs=[vmem, vmem, vmem],
        out_specs=(vmem, vmem),
        scratch_shapes=[pltpu.VMEM((T, H2), jnp.float32)],
    )
    # TODO(synk): a leading "parallel" batch grid axis would use both v7x TCs;
    # the module's forward is single-sequence (x.view(1,-1)), so grid=(1,).
    logp_pad, hc = pl.pallas_call(
        poetry_kernel,
        out_shape=out_shapes,
        grid_spec=grid_spec,
        compiler_params=pltpu.CompilerParams(
            dimension_semantics=("arbitrary",)),
    )(tok_col, prepared["blob"], state)

    logp = logp_pad[:, :NUM_WORDS]
    hn = hc[0].reshape(LAYERS_NUM, 1, HIDDEN_SIZE)
    cn = hc[1].reshape(LAYERS_NUM, 1, HIDDEN_SIZE)
    return logp, (hn, cn)


def reference_forward(x, hidden, params):
    """Pure-JAX reference mirroring the PyTorch forward (eval-mode)."""
    h0, c0 = hidden
    tok = x.reshape(-1)
    seq = params["embedding"][tok].astype(jnp.float32)

    def lstm_layer(seq, h, c, w_ih, w_hh, b_ih, b_hh):
        outs = []
        for t in range(seq.shape[0]):
            gates = seq[t] @ w_ih.T + h @ w_hh.T + b_ih + b_hh
            i, f, g, o = jnp.split(gates, 4)
            i, f, o = jax.nn.sigmoid(i), jax.nn.sigmoid(f), jax.nn.sigmoid(o)
            g = jnp.tanh(g)
            c = f * c + i * g
            h = o * jnp.tanh(c)
            outs.append(h)
        return jnp.stack(outs), h, c

    # TODO(synk): nn.LSTM inter-layer dropout(0.5) is train-mode only; eval here.
    s0, h_f0, c_f0 = lstm_layer(seq, h0[0, 0], c0[0, 0],
                                params["w_ih0"], params["w_hh0"],
                                params["b_ih0"], params["b_hh0"])
    s1, h_f1, c_f1 = lstm_layer(s0, h0[1, 0], c0[1, 0],
                                params["w_ih1"], params["w_hh1"],
                                params["b_ih1"], params["b_hh1"])
    fc = s1 @ params["fc_w"].T + params["fc_b"]
    act = jnp.where(fc >= 0, fc, NEG_SLOPE * fc)
    logp = jax.nn.log_softmax(act, axis=-1)
    hn = jnp.stack([h_f0, h_f1])[:, None, :]
    cn = jnp.stack([c_f0, c_f1])[:, None, :]
    return logp, (hn, cn)


if __name__ == "__main__":
    key = jax.random.PRNGKey(0)
    k_par, k_x, k_h, k_c = jax.random.split(key, 4)

    params = init_params(k_par)
    prepared = prepare_params(params)   # one-time layout prep / blob packing

    x = jax.random.randint(k_x, (SEQ_LEN,), 0, NUM_WORDS, dtype=jnp.int32)
    h0 = jax.random.normal(k_h, (LAYERS_NUM, 1, HIDDEN_SIZE), jnp.float32)
    c0 = jax.random.normal(k_c, (LAYERS_NUM, 1, HIDDEN_SIZE), jnp.float32)

    forward = jax.jit(poetry_creator_forward)
    logp, (hn, cn) = forward(x, (h0, c0), prepared)
    jax.block_until_ready((logp, hn, cn))

    ref_logp, (ref_hn, ref_cn) = reference_forward(x, (h0, c0), params)
    assert jnp.allclose(logp, ref_logp, atol=1e-4, rtol=1e-4)
    assert jnp.allclose(hn, ref_hn, atol=1e-4, rtol=1e-4)
    assert jnp.allclose(cn, ref_cn, atol=1e-4, rtol=1e-4)

    print("KERNEL_OK")
</pallas_src>

<mosaic_0001>
module attributes {stable_mosaic.version = 11 : i64} {
  func.func @poetry_kernel(%arg0: i32, %arg1: memref<9x1xi32, #tpu.memory_space<vmem>>, %arg2: memref<208x256xf32, #tpu.memory_space<vmem>>, %arg3: memref<2x64xf32, #tpu.memory_space<vmem>>, %arg4: memref<8x128xf32, #tpu.memory_space<vmem>>, %arg5: memref<2x64xf32, #tpu.memory_space<vmem>>, %arg6: memref<8x64xf32, #tpu.memory_space<vmem>>) attributes {dimension_semantics = [#tpu.dimension_semantics<arbitrary>], iteration_bounds = array<i64: 1>, scalar_prefetch = 0 : i64, scratch_operands = 1 : i64, tpu.core_type = #tpu.core_type<tc>, window_params = [{pipeline_mode = #tpu.pipeline_mode<synchronous>, transform_indices = @transform_0, window_bounds = array<i64: 9, 1>}, {pipeline_mode = #tpu.pipeline_mode<synchronous>, transform_indices = @transform_1, window_bounds = array<i64: 208, 256>}, {pipeline_mode = #tpu.pipeline_mode<synchronous>, transform_indices = @transform_2, window_bounds = array<i64: 2, 64>}, {pipeline_mode = #tpu.pipeline_mode<synchronous>, transform_indices = @transform_3, window_bounds = array<i64: 8, 128>}, {pipeline_mode = #tpu.pipeline_mode<synchronous>, transform_indices = @transform_4, window_bounds = array<i64: 2, 64>}]} {
    %c0 = arith.constant 0 : index
    %c0_0 = arith.constant 0 : index
    %0 = vector.load %arg2[%c0, %c0_0] : memref<208x256xf32, #tpu.memory_space<vmem>>, vector<64x256xf32>
    %c64 = arith.constant 64 : index
    %c0_1 = arith.constant 0 : index
    %1 = vector.load %arg2[%c64, %c0_1] : memref<208x256xf32, #tpu.memory_space<vmem>>, vector<64x256xf32>
    %c128 = arith.constant 128 : index
    %c0_2 = arith.constant 0 : index
    %2 = vector.load %arg2[%c128, %c0_2] : memref<208x256xf32, #tpu.memory_space<vmem>>, vector<64x128xf32>
    %c192 = arith.constant 192 : index
    %c0_3 = arith.constant 0 : index
    %3 = vector.load %arg2[%c192, %c0_3] : memref<208x256xf32, #tpu.memory_space<vmem>>, vector<1x256xf32>
    %c200 = arith.constant 200 : index
    %c0_4 = arith.constant 0 : index
    %4 = vector.load %arg2[%c200, %c0_4] : memref<208x256xf32, #tpu.memory_space<vmem>>, vector<1x128xf32>
    %5 = tpu.iota {dimensions = array<i32: 1>} : vector<9x64xi32>
    %c0_5 = arith.constant 0 : index
    %c0_6 = arith.constant 0 : index
    %6 = vector.load %arg1[%c0_5, %c0_6] : memref<9x1xi32, #tpu.memory_space<vmem>>, vector<9x1xi32>
    %7 = vector.broadcast %6 : vector<9x1xi32> to vector<9x64xi32>
    %8 = arith.cmpi eq, %5, %7 : vector<9x64xi32>
    %9 = arith.extui %8 : vector<9x64xi1> to vector<9x64xi32>
    %10 = arith.sitofp %9 : vector<9x64xi32> to vector<9x64xf32>
    %cst = arith.constant dense<0.000000e+00> : vector<9x256xf32>
    %11 = tpu.matmul %10, %1, %cst {dimension_numbers = #tpu.dot_dimension_numbers<[1], [0], [0], [1], [0, 0, 1, 1], [], []>} : vector<9x64xf32>, vector<64x256xf32>, vector<9x256xf32> -> vector<9x256xf32>
    %12 = vector.broadcast %3 : vector<1x256xf32> to vector<9x256xf32>
    %13 = arith.addf %11, %12 : vector<9x256xf32>
    %14 = tpu.iota {dimensions = array<i32: 1>} : vector<1x64xi32>
    %c32_i32 = arith.constant 32 : i32
    %15 = vector.broadcast %c32_i32 : i32 to vector<1x64xi32>
    %16 = arith.cmpi slt, %14, %15 : vector<1x64xi32>
    %c0_7 = arith.constant 0 : index
    %c0_8 = arith.constant 0 : index
    %17 = vector.load %arg3[%c0_7, %c0_8] : memref<2x64xf32, #tpu.memory_space<vmem>>, vector<1x64xf32>
    %c1 = arith.constant 1 : index
    %c0_9 = arith.constant 0 : index
    %18 = vector.load %arg3[%c1, %c0_9] : memref<2x64xf32, #tpu.memory_space<vmem>>, vector<1x64xf32>
    %cst_10 = arith.constant dense<0.000000e+00> : vector<1x256xf32>
    %19 = tpu.matmul %17, %0, %cst_10 {dimension_numbers = #tpu.dot_dimension_numbers<[1], [0], [0], [1], [0, 0, 1, 1], [], []>} : vector<1x64xf32>, vector<64x256xf32>, vector<1x256xf32> -> vector<1x256xf32>
    %20 = vector.extract_strided_slice %13 {offsets = [0, 0], sizes = [1, 256], strides = [1, 1]} : vector<9x256xf32> to vector<1x256xf32>
    %21 = arith.addf %19, %20 : vector<1x256xf32>
    %22 = arith.negf %21 : vector<1x256xf32>
    %23 = math.exp %22 : vector<1x256xf32>
    %cst_11 = arith.constant 1.000000e+00 : f32
    %24 = vector.broadcast %cst_11 : f32 to vector<1x256xf32>
    %25 = arith.addf %24, %23 : vector<1x256xf32>
    %26 = arith.divf %24, %25 : vector<1x256xf32>
    %27 = math.tanh %21 : vector<1x256xf32>
    %28 = vector.extract_strided_slice %26 {offsets = [0, 0], sizes = [1, 64], strides = [1, 1]} : vector<1x256xf32> to vector<1x64xf32>
    %29 = vector.extract_strided_slice %26 {offsets = [0, 64], sizes = [1, 64], strides = [1, 1]} : vector<1x256xf32> to vector<1x64xf32>
    %30 = vector.extract_strided_slice %27 {offsets = [0, 128], sizes = [1, 64], strides = [1, 1]} : vector<1x256xf32> to vector<1x64xf32>
    %31 = vector.extract_strided_slice %26 {offsets = [0, 192], sizes = [1, 64], strides = [1, 1]} : vector<1x256xf32> to vector<1x64xf32>
    %32 = arith.mulf %29, %18 : vector<1x64xf32>
    %33 = arith.mulf %28, %30 : vector<1x64xf32>
    %34 = arith.addf %32, %33 : vector<1x64xf32>
    %35 = math.tanh %34 : vector<1x64xf32>
    %36 = arith.mulf %31, %35 : vector<1x64xf32>
    %37 = arith.select %16, %34, %18 : vector<1x64xi1>, vector<1x64xf32>
    %38 = arith.select %16, %36, %17 : vector<1x64xi1>, vector<1x64xf32>
    %cst_12 = arith.constant dense<0.000000e+00> : vector<1x256xf32>
    %39 = tpu.matmul %38, %0, %cst_12 {dimension_numbers = #tpu.dot_dimension_numbers<[1], [0], [0], [1], [0, 0, 1, 1], [], []>} : vector<1x64xf32>, vector<64x256xf32>, vector<1x256xf32> -> vector<1x256xf32>
    %40 = vector.extract_strided_slice %13 {offsets = [1, 0], sizes = [1, 256], strides = [1, 1]} : vector<9x256xf32> to vector<1x256xf32>
    %41 = arith.addf %39, %40 : vector<1x256xf32>
    %42 = arith.negf %41 : vector<1x256xf32>
    %43 = math.exp %42 : vector<1x256xf32>
    %cst_13 = arith.constant 1.000000e+00 : f32
    %44 = vector.broadcast %cst_13 : f32 to vector<1x256xf32>
    %45 = arith.addf %44, %43 : vector<1x256xf32>
    %46 = arith.divf %44, %45 : vector<1x256xf32>
    %47 = math.tanh %41 : vector<1x256xf32>
    %48 = vector.extract_strided_slice %46 {offsets = [0, 0], sizes = [1, 64], strides = [1, 1]} : vector<1x256xf32> to vector<1x64xf32>
    %49 = vector.extract_strided_slice %46 {offsets = [0, 64], sizes = [1, 64], strides = [1, 1]} : vector<1x256xf32> to vector<1x64xf32>
    %50 = vector.extract_strided_slice %47 {offsets = [0, 128], sizes = [1, 64], strides = [1, 1]} : vector<1x256xf32> to vector<1x64xf32>
    %51 = vector.extract_strided_slice %46 {offsets = [0, 192], sizes = [1, 64], strides = [1, 1]} : vector<1x256xf32> to vector<1x64xf32>
    %52 = arith.mulf %49, %37 : vector<1x64xf32>
    %53 = arith.mulf %48, %50 : vector<1x64xf32>
    %54 = arith.addf %52, %53 : vector<1x64xf32>
    %55 = math.tanh %54 : vector<1x64xf32>
    %56 = arith.mulf %51, %55 : vector<1x64xf32>
    %c0_14 = arith.constant 0 : index
    %c0_15 = arith.constant 0 : index
    %57 = vector.load %arg6[%c0_14, %c0_15] : memref<8x64xf32, #tpu.memory_space<vmem>>, vector<1x64xf32>
    tpu.vector_store %arg6[%c0_14, %c0_15], %56 {strides = array<i32>} : memref<8x64xf32, #tpu.memory_space<vmem>>, vector<1x64xf32>,
    %cst_16 = arith.constant dense<0.000000e+00> : vector<1x256xf32>
    %58 = tpu.matmul %56, %0, %cst_16 {dimension_numbers = #tpu.dot_dimension_numbers<[1], [0], [0], [1], [0, 0, 1, 1], [], []>} : vector<1x64xf32>, vector<64x256xf32>, vector<1x256xf32> -> vector<1x256xf32>
    %59 = vector.extract_strided_slice %13 {offsets = [2, 0], sizes = [1, 256], strides = [1, 1]} : vector<9x256xf32> to vector<1x256xf32>
    %60 = arith.addf %58, %59 : vector<1x256xf32>
    %61 = arith.negf %60 : vector<1x256xf32>
    %62 = math.exp %61 : vector<1x256xf32>
    %cst_17 = arith.constant 1.000000e+00 : f32
    %63 = vector.broadcast %cst_17 : f32 to vector<1x256xf32>
    %64 = arith.addf %63, %62 : vector<1x256xf32>
    %65 = arith.divf %63, %64 : vector<1x256xf32>
    %66 = math.tanh %60 : vector<1x256xf32>
    %67 = vector.extract_strided_slice %65 {offsets = [0, 0], sizes = [1, 64], strides = [1, 1]} : vector<1x256xf32> to vector<1x64xf32>
    %68 = vector.extract_strided_slice %65 {offsets = [0, 64], sizes = [1, 64], strides = [1, 1]} : vector<1x256xf32> to vector<1x64xf32>
    %69 = vector.extract_strided_slice %66 {offsets = [0, 128], sizes = [1, 64], strides = [1, 1]} : vector<1x256xf32> to vector<1x64xf32>
    %70 = vector.extract_strided_slice %65 {offsets = [0, 192], sizes = [1, 64], strides = [1, 1]} : vector<1x256xf32> to vector<1x64xf32>
    %71 = arith.mulf %68, %54 : vector<1x64xf32>
    %72 = arith.mulf %67, %69 : vector<1x64xf32>
    %73 = arith.addf %71, %72 : vector<1x64xf32>
    %74 = math.tanh %73 : vector<1x64xf32>
    %75 = arith.mulf %70, %74 : vector<1x64xf32>
    %c1_18 = arith.constant 1 : index
    %c0_19 = arith.constant 0 : index
    %76 = vector.load %arg6[%c1_18, %c0_19] : memref<8x64xf32, #tpu.memory_space<vmem>>, vector<1x64xf32>
    tpu.vector_store %arg6[%c1_18, %c0_19], %75 {strides = array<i32>} : memref<8x64xf32, #tpu.memory_space<vmem>>, vector<1x64xf32>,
    %cst_20 = arith.constant dense<0.000000e+00> : vector<1x256xf32>
    %77 = tpu.matmul %75, %0, %cst_20 {dimension_numbers = #tpu.dot_dimension_numbers<[1], [0], [0], [1], [0, 0, 1, 1], [], []>} : vector<1x64xf32>, vector<64x256xf32>, vector<1x256xf32> -> vector<1x256xf32>
    %78 = vector.extract_strided_slice %13 {offsets = [3, 0], sizes = [1, 256], strides = [1, 1]} : vector<9x256xf32> to vector<1x256xf32>
    %79 = arith.addf %77, %78 : vector<1x256xf32>
    %80 = arith.negf %79 : vector<1x256xf32>
    %81 = math.exp %80 : vector<1x256xf32>
    %cst_21 = arith.constant 1.000000e+00 : f32
    %82 = vector.broadcast %cst_21 : f32 to vector<1x256xf32>
    %83 = arith.addf %82, %81 : vector<1x256xf32>
    %84 = arith.divf %82, %83 : vector<1x256xf32>
    %85 = math.tanh %79 : vector<1x256xf32>
    %86 = vector.extract_strided_slice %84 {offsets = [0, 0], sizes = [1, 64], strides = [1, 1]} : vector<1x256xf32> to vector<1x64xf32>
    %87 = vector.extract_strided_slice %84 {offsets = [0, 64], sizes = [1, 64], strides = [1, 1]} : vector<1x256xf32> to vector<1x64xf32>
    %88 = vector.extract_strided_slice %85 {offsets = [0, 128], sizes = [1, 64], strides = [1, 1]} : vector<1x256xf32> to vector<1x64xf32>
    %89 = vector.extract_strided_slice %84 {offsets = [0, 192], sizes = [1, 64], strides = [1, 1]} : vector<1x256xf32> to vector<1x64xf32>
    %90 = arith.mulf %87, %73 : vector<1x64xf32>
    %91 = arith.mulf %86, %88 : vector<1x64xf32>
    %92 = arith.addf %90, %91 : vector<1x64xf32>
    %93 = math.tanh %92 : vector<1x64xf32>
    %94 = arith.mulf %89, %93 : vector<1x64xf32>
    %c2 = arith.constant 2 : index
    %c0_22 = arith.constant 0 : index
    %95 = vector.load %arg6[%c2, %c0_22] : memref<8x64xf32, #tpu.memory_space<vmem>>, vector<1x64xf32>
    tpu.vector_store %arg6[%c2, %c0_22], %94 {strides = array<i32>} : memref<8x64xf32, #tpu.memory_space<vmem>>, vector<1x64xf32>,
    %cst_23 = arith.constant dense<0.000000e+00> : vector<1x256xf32>
    %96 = tpu.matmul %94, %0, %cst_23 {dimension_numbers = #tpu.dot_dimension_numbers<[1], [0], [0], [1], [0, 0, 1, 1], [], []>} : vector<1x64xf32>, vector<64x256xf32>, vector<1x256xf32> -> vector<1x256xf32>
    %97 = vector.extract_strided_slice %13 {offsets = [4, 0], sizes = [1, 256], strides = [1, 1]} : vector<9x256xf32> to vector<1x256xf32>
    %98 = arith.addf %96, %97 : vector<1x256xf32>
    %99 = arith.negf %98 : vector<1x256xf32>
    %100 = math.exp %99 : vector<1x256xf32>
    %cst_24 = arith.constant 1.000000e+00 : f32
    %101 = vector.broadcast %cst_24 : f32 to vector<1x256xf32>
    %102 = arith.addf %101, %100 : vector<1x256xf32>
    %103 = arith.divf %101, %102 : vector<1x256xf32>
    %104 = math.tanh %98 : vector<1x256xf32>
    %105 = vector.extract_strided_slice %103 {offsets = [0, 0], sizes = [1, 64], strides = [1, 1]} : vector<1x256xf32> to vector<1x64xf32>
    %106 = vector.extract_strided_slice %103 {offsets = [0, 64], sizes = [1, 64], strides = [1, 1]} : vector<1x256xf32> to vector<1x64xf32>
    %107 = vector.extract_strided_slice %104 {offsets = [0, 128], sizes = [1, 64], strides = [1, 1]} : vector<1x256xf32> to vector<1x64xf32>
    %108 = vector.extract_strided_slice %103 {offsets = [0, 192], sizes = [1, 64], strides = [1, 1]} : vector<1x256xf32> to vector<1x64xf32>
    %109 = arith.mulf %106, %92 : vector<1x64xf32>
    %110 = arith.mulf %105, %107 : vector<1x64xf32>
    %111 = arith.addf %109, %110 : vector<1x64xf32>
    %112 = math.tanh %111 : vector<1x64xf32>
    %113 = arith.mulf %108, %112 : vector<1x64xf32>
    %c3 = arith.constant 3 : index
    %c0_25 = arith.constant 0 : index
    %114 = vector.load %arg6[%c3, %c0_25] : memref<8x64xf32, #tpu.memory_space<vmem>>, vector<1x64xf32>
    tpu.vector_store %arg6[%c3, %c0_25], %113 {strides = array<i32>} : memref<8x64xf32, #tpu.memory_space<vmem>>, vector<1x64xf32>,
    %cst_26 = arith.constant dense<0.000000e+00> : vector<1x256xf32>
    %115 = tpu.matmul %113, %0, %cst_26 {dimension_numbers = #tpu.dot_dimension_numbers<[1], [0], [0], [1], [0, 0, 1, 1], [], []>} : vector<1x64xf32>, vector<64x256xf32>, vector<1x256xf32> -> vector<1x256xf32>
    %116 = vector.extract_strided_slice %13 {offsets = [5, 0], sizes = [1, 256], strides = [1, 1]} : vector<9x256xf32> to vector<1x256xf32>
    %117 = arith.addf %115, %116 : vector<1x256xf32>
    %118 = arith.negf %117 : vector<1x256xf32>
    %119 = math.exp %118 : vector<1x256xf32>
    %cst_27 = arith.constant 1.000000e+00 : f32
    %120 = vector.broadcast %cst_27 : f32 to vector<1x256xf32>
    %121 = arith.addf %120, %119 : vector<1x256xf32>
    %122 = arith.divf %120, %121 : vector<1x256xf32>
    %123 = math.tanh %117 : vector<1x256xf32>
    %124 = vector.extract_strided_slice %122 {offsets = [0, 0], sizes = [1, 64], strides = [1, 1]} : vector<1x256xf32> to vector<1x64xf32>
    %125 = vector.extract_strided_slice %122 {offsets = [0, 64], sizes = [1, 64], strides = [1, 1]} : vector<1x256xf32> to vector<1x64xf32>
    %126 = vector.extract_strided_slice %123 {offsets = [0, 128], sizes = [1, 64], strides = [1, 1]} : vector<1x256xf32> to vector<1x64xf32>
    %127 = vector.extract_strided_slice %122 {offsets = [0, 192], sizes = [1, 64], strides = [1, 1]} : vector<1x256xf32> to vector<1x64xf32>
    %128 = arith.mulf %125, %111 : vector<1x64xf32>
    %129 = arith.mulf %124, %126 : vector<1x64xf32>
    %130 = arith.addf %128, %129 : vector<1x64xf32>
    %131 = math.tanh %130 : vector<1x64xf32>
    %132 = arith.mulf %127, %131 : vector<1x64xf32>
    %c4 = arith.constant 4 : index
    %c0_28 = arith.constant 0 : index
    %133 = vector.load %arg6[%c4, %c0_28] : memref<8x64xf32, #tpu.memory_space<vmem>>, vector<1x64xf32>
    tpu.vector_store %arg6[%c4, %c0_28], %132 {strides = array<i32>} : memref<8x64xf32, #tpu.memory_space<vmem>>, vector<1x64xf32>,
    %cst_29 = arith.constant dense<0.000000e+00> : vector<1x256xf32>
    %134 = tpu.matmul %132, %0, %cst_29 {dimension_numbers = #tpu.dot_dimension_numbers<[1], [0], [0], [1], [0, 0, 1, 1], [], []>} : vector<1x64xf32>, vector<64x256xf32>, vector<1x256xf32> -> vector<1x256xf32>
    %135 = vector.extract_strided_slice %13 {offsets = [6, 0], sizes = [1, 256], strides = [1, 1]} : vector<9x256xf32> to vector<1x256xf32>
    %136 = arith.addf %134, %135 : vector<1x256xf32>
    %137 = arith.negf %136 : vector<1x256xf32>
    %138 = math.exp %137 : vector<1x256xf32>
    %cst_30 = arith.constant 1.000000e+00 : f32
    %139 = vector.broadcast %cst_30 : f32 to vector<1x256xf32>
    %140 = arith.addf %139, %138 : vector<1x256xf32>
    %141 = arith.divf %139, %140 : vector<1x256xf32>
    %142 = math.tanh %136 : vector<1x256xf32>
    %143 = vector.extract_strided_slice %141 {offsets = [0, 0], sizes = [1, 64], strides = [1, 1]} : vector<1x256xf32> to vector<1x64xf32>
    %144 = vector.extract_strided_slice %141 {offsets = [0, 64], sizes = [1, 64], strides = [1, 1]} : vector<1x256xf32> to vector<1x64xf32>
    %145 = vector.extract_strided_slice %142 {offsets = [0, 128], sizes = [1, 64], strides = [1, 1]} : vector<1x256xf32> to vector<1x64xf32>
    %146 = vector.extract_strided_slice %141 {offsets = [0, 192], sizes = [1, 64], strides = [1, 1]} : vector<1x256xf32> to vector<1x64xf32>
    %147 = arith.mulf %144, %130 : vector<1x64xf32>
    %148 = arith.mulf %143, %145 : vector<1x64xf32>
    %149 = arith.addf %147, %148 : vector<1x64xf32>
    %150 = math.tanh %149 : vector<1x64xf32>
    %151 = arith.mulf %146, %150 : vector<1x64xf32>
    %c5 = arith.constant 5 : index
    %c0_31 = arith.constant 0 : index
    %152 = vector.load %arg6[%c5, %c0_31] : memref<8x64xf32, #tpu.memory_space<vmem>>, vector<1x64xf32>
    tpu.vector_store %arg6[%c5, %c0_31], %151 {strides = array<i32>} : memref<8x64xf32, #tpu.memory_space<vmem>>, vector<1x64xf32>,
    %cst_32 = arith.constant dense<0.000000e+00> : vector<1x256xf32>
    %153 = tpu.matmul %151, %0, %cst_32 {dimension_numbers = #tpu.dot_dimension_numbers<[1], [0], [0], [1], [0, 0, 1, 1], [], []>} : vector<1x64xf32>, vector<64x256xf32>, vector<1x256xf32> -> vector<1x256xf32>
    %154 = vector.extract_strided_slice %13 {offsets = [7, 0], sizes = [1, 256], strides = [1, 1]} : vector<9x256xf32> to vector<1x256xf32>
    %155 = arith.addf %153, %154 : vector<1x256xf32>
    %156 = arith.negf %155 : vector<1x256xf32>
    %157 = math.exp %156 : vector<1x256xf32>
    %cst_33 = arith.constant 1.000000e+00 : f32
    %158 = vector.broadcast %cst_33 : f32 to vector<1x256xf32>
    %159 = arith.addf %158, %157 : vector<1x256xf32>
    %160 = arith.divf %158, %159 : vector<1x256xf32>
    %161 = math.tanh %155 : vector<1x256xf32>
    %162 = vector.extract_strided_slice %160 {offsets = [0, 0], sizes = [1, 64], strides = [1, 1]} : vector<1x256xf32> to vector<1x64xf32>
    %163 = vector.extract_strided_slice %160 {offsets = [0, 64], sizes = [1, 64], strides = [1, 1]} : vector<1x256xf32> to vector<1x64xf32>
    %164 = vector.extract_strided_slice %161 {offsets = [0, 128], sizes = [1, 64], strides = [1, 1]} : vector<1x256xf32> to vector<1x64xf32>
    %165 = vector.extract_strided_slice %160 {offsets = [0, 192], sizes = [1, 64], strides = [1, 1]} : vector<1x256xf32> to vector<1x64xf32>
    %166 = arith.mulf %163, %149 : vector<1x64xf32>
    %167 = arith.mulf %162, %164 : vector<1x64xf32>
    %168 = arith.addf %166, %167 : vector<1x64xf32>
    %169 = math.tanh %168 : vector<1x64xf32>
    %170 = arith.mulf %165, %169 : vector<1x64xf32>
    %c6 = arith.constant 6 : index
    %c0_34 = arith.constant 0 : index
    %171 = vector.load %arg6[%c6, %c0_34] : memref<8x64xf32, #tpu.memory_space<vmem>>, vector<1x64xf32>
    tpu.vector_store %arg6[%c6, %c0_34], %170 {strides = array<i32>} : memref<8x64xf32, #tpu.memory_space<vmem>>, vector<1x64xf32>,
    %cst_35 = arith.constant dense<0.000000e+00> : vector<1x256xf32>
    %172 = tpu.matmul %170, %0, %cst_35 {dimension_numbers = #tpu.dot_dimension_numbers<[1], [0], [0], [1], [0, 0, 1, 1], [], []>} : vector<1x64xf32>, vector<64x256xf32>, vector<1x256xf32> -> vector<1x256xf32>
    %173 = vector.extract_strided_slice %13 {offsets = [8, 0], sizes = [1, 256], strides = [1, 1]} : vector<9x256xf32> to vector<1x256xf32>
    %174 = arith.addf %172, %173 : vector<1x256xf32>
    %175 = arith.negf %174 : vector<1x256xf32>
    %176 = math.exp %175 : vector<1x256xf32>
    %cst_36 = arith.constant 1.000000e+00 : f32
    %177 = vector.broadcast %cst_36 : f32 to vector<1x256xf32>
    %178 = arith.addf %177, %176 : vector<1x256xf32>
    %179 = arith.divf %177, %178 : vector<1x256xf32>
    %180 = math.tanh %174 : vector<1x256xf32>
    %181 = vector.extract_strided_slice %179 {offsets = [0, 0], sizes = [1, 64], strides = [1, 1]} : vector<1x256xf32> to vector<1x64xf32>
    %182 = vector.extract_strided_slice %179 {offsets = [0, 64], sizes = [1, 64], strides = [1, 1]} : vector<1x256xf32> to vector<1x64xf32>
    %183 = vector.extract_strided_slice %180 {offsets = [0, 128], sizes = [1, 64], strides = [1, 1]} : vector<1x256xf32> to vector<1x64xf32>
    %184 = vector.extract_strided_slice %179 {offsets = [0, 192], sizes = [1, 64], strides = [1, 1]} : vector<1x256xf32> to vector<1x64xf32>
    %185 = arith.mulf %182, %168 : vector<1x64xf32>
    %186 = arith.mulf %181, %183 : vector<1x64xf32>
    %187 = arith.addf %185, %186 : vector<1x64xf32>
    %188 = math.tanh %187 : vector<1x64xf32>
    %189 = arith.mulf %184, %188 : vector<1x64xf32>
    %190 = arith.select %16, %168, %187 : vector<1x64xi1>, vector<1x64xf32>
    %191 = arith.select %16, %170, %189 : vector<1x64xi1>, vector<1x64xf32>
    %c7 = arith.constant 7 : index
    %c0_37 = arith.constant 0 : index
    %192 = vector.load %arg6[%c7, %c0_37] : memref<8x64xf32, #tpu.memory_space<vmem>>, vector<1x64xf32>
    tpu.vector_store %arg6[%c7, %c0_37], %191 {strides = array<i32>} : memref<8x64xf32, #tpu.memory_space<vmem>>, vector<1x64xf32>,
    %c0_38 = arith.constant 0 : index
    %c0_39 = arith.constant 0 : index
    %193 = vector.load %arg5[%c0_38, %c0_39] : memref<2x64xf32, #tpu.memory_space<vmem>>, vector<1x64xf32>
    tpu.vector_store %arg5[%c0_38, %c0_39], %191 {strides = array<i32>} : memref<2x64xf32, #tpu.memory_space<vmem>>, vector<1x64xf32>,
    %c1_40 = arith.constant 1 : index
    %c0_41 = arith.constant 0 : index
    %194 = vector.load %arg5[%c1_40, %c0_41] : memref<2x64xf32, #tpu.memory_space<vmem>>, vector<1x64xf32>
    tpu.vector_store %arg5[%c1_40, %c0_41], %190 {strides = array<i32>} : memref<2x64xf32, #tpu.memory_space<vmem>>, vector<1x64xf32>,
    %c0_42 = arith.constant 0 : index
    %c0_43 = arith.constant 0 : index
    %195 = vector.load %arg6[%c0_42, %c0_43] : memref<8x64xf32, #tpu.memory_space<vmem>>, vector<8x64xf32>
    %cst_44 = arith.constant dense<0.000000e+00> : vector<8x128xf32>
    %196 = tpu.matmul %195, %2, %cst_44 {dimension_numbers = #tpu.dot_dimension_numbers<[1], [0], [0], [1], [0, 0, 1, 1], [], []>} : vector<8x64xf32>, vector<64x128xf32>, vector<8x128xf32> -> vector<8x128xf32>
    %197 = vector.broadcast %4 : vector<1x128xf32> to vector<8x128xf32>
    %198 = arith.addf %196, %197 : vector<8x128xf32>
    %cst_45 = arith.constant 0.000000e+00 : f32
    %199 = vector.broadcast %cst_45 : f32 to vector<8x128xf32>
    %200 = arith.cmpf oge, %198, %199 : vector<8x128xf32>
    %cst_46 = arith.constant 0.00999999977 : f32
    %201 = vector.broadcast %cst_46 : f32 to vector<8x128xf32>
    %202 = arith.mulf %201, %198 : vector<8x128xf32>
    %203 = arith.select %200, %198, %202 : vector<8x128xi1>, vector<8x128xf32>
    %cst_47 = arith.constant dense<0xFF800000> : vector<8xf32>
    %204 = vector.multi_reduction <maximumf>, %203, %cst_47 [1] : vector<8x128xf32> to vector<8xf32>
    %205 = vector.shape_cast %204 : vector<8xf32> to vector<8x1xf32>
    %206 = vector.broadcast %205 : vector<8x1xf32> to vector<8x128xf32>
    %207 = arith.subf %203, %206 : vector<8x128xf32>
    %208 = math.exp %207 : vector<8x128xf32>
    %cst_48 = arith.constant dense<0.000000e+00> : vector<8xf32>
    %209 = vector.multi_reduction <add>, %208, %cst_48 [1] : vector<8x128xf32> to vector<8xf32>
    %210 = vector.shape_cast %209 : vector<8xf32> to vector<8x1xf32>
    %211 = math.log %210 : vector<8x1xf32>
    %212 = vector.broadcast %211 : vector<8x1xf32> to vector<8x128xf32>
    %213 = arith.subf %207, %212 : vector<8x128xf32>
    %c0_49 = arith.constant 0 : index
    %c0_50 = arith.constant 0 : index
    %214 = vector.load %arg4[%c0_49, %c0_50] : memref<8x128xf32, #tpu.memory_space<vmem>>, vector<8x128xf32>
    tpu.vector_store %arg4[%c0_49, %c0_50], %213 {strides = array<i32>} : memref<8x128xf32, #tpu.memory_space<vmem>>, vector<8x128xf32>,
    return
  }
  func.func @transform_0(%arg0: i32) -> (i32, i32) {
    %c0_i32 = arith.constant 0 : i32
    %c0_i32_0 = arith.constant 0 : i32
    %c0_i32_1 = arith.constant 0 : i32
    return %c0_i32, %c0_i32_0 : i32, i32
  }
  func.func @transform_1(%arg0: i32) -> (i32, i32) {
    %c0_i32 = arith.constant 0 : i32
    %c0_i32_0 = arith.constant 0 : i32
    %c0_i32_1 = arith.constant 0 : i32
    return %c0_i32, %c0_i32_0 : i32, i32
  }
  func.func @transform_2(%arg0: i32) -> (i32, i32) {
    %c0_i32 = arith.constant 0 : i32
    %c0_i32_0 = arith.constant 0 : i32
    %c0_i32_1 = arith.constant 0 : i32
    return %c0_i32, %c0_i32_0 : i32, i32
  }
  func.func @transform_3(%arg0: i32) -> (i32, i32) {
    %c0_i32 = arith.constant 0 : i32
    %c0_i32_0 = arith.constant 0 : i32
    %c0_i32_1 = arith.constant 0 : i32
    return %c0_i32, %c0_i32_0 : i32, i32
  }
  func.func @transform_4(%arg0: i32) -> (i32, i32) {
    %c0_i32 = arith.constant 0 : i32
    %c0_i32_0 = arith.constant 0 : i32
    %c0_i32_1 = arith.constant 0 : i32
    return %c0_i32, %c0_i32_0 : i32, i32
  }
}

</mosaic_0001>

<llo_original>
// kernel: squeeze.3
$region0: #{squeeze.3}
  %s0 = inlined_call_operand.vmem [shape: f32[64], index: 0, kind: input, shape index: {}]
  %s1 = inlined_call_operand.hbm [shape: f32[2,1,32], index: 1, kind: output, shape index: {}]
  $region1: #{squeeze.3} parent=0
    #allocation0 [shape = 'u8[1024]{0}', space=vmem, size = 0x400, scoped, tag = 'operand span for operand 1']
    #allocation1 [shape = 's32[1]{0}', space=sflag, size = 0x4, scoped, tag = 'scoped memory for squeeze.3']
    #allocation2 [shape = 'u8[4096]{0}', space=vmem, size = 0x1000, scoped, tag = 'scoped mem for output reshape']
    #allocation3 [shape = 'u8[4096]{0}', space=vmem, size = 0x1000, scoped, tag = 'scoped mem for input reshape']
    %2 = vsyncpa [#allocation1], 0
    %s4 = sshllo.u32 0, 1
    %v5 = vld [vmem:[%s0] sm:%s4]
    %6 = vst [vmem:[#allocation3] sm:%s4] %v5
    %v7 = vld [vmem:[#allocation3] sm:$0x1]
    %vm8 = vcmask 261120
    %9 = vst.msk [vmem:[#allocation2] sm:$0x1] %vm8, %v7
    %v10 = vld [vmem:[#allocation3] sm:$0x1]
    %11 = vrot.lane.b32.xlu0 %v10, 96
    %v12 = vpop.permute.xlu0 %11
    %vm13 = vcmask 261120
    %s14 = scalar_lea.vmem [#allocation2], 1
    %15 = vst.msk [vmem:[%s14] sm:$0x1] %vm13, %v12
    %s17 = sshllo.u32 0, 2
    %v19 = vld [vmem:[#allocation2] sm:%s17]
    %s20 = sshllo.u32 0, 2
    %21 = vst [vmem:[#allocation0] sm:%s20] %v19
    %s23 = ssub.s32 32, 32
    %24 = vsyncadd [#allocation1], %s23
    %s26 = sshll.u32 [#allocation0], 4
    %s27 = int_to_ptr.vmem [resolvable:$true] %s26
    %29 = dma.vmem_to_hbm [thread:$0]  %s27, 32, %s1, [#allocation1]
    %30 = dma.done [#allocation1], 32
    %31 = vsyncpa [#allocation1], 1

// kernel: poetry_creator_forward.1
$region0: #{poetry_creator_forward.1}
  #allocation0 [shape = 'u32[]', space=smem, size = 0x4, offset = 0x4, fixed_abs, tag = 'smem constant byte address 0x4 - core index']
  #allocation1 [shape = 'u32[144,128]{1,0:T(1,128)}', space=vmem, size = 0x12000, scoped, tag = 'internal scratch']
  #allocation2 [shape = 'f32[8,64]{1,0:T(8,128)}', space=vmem, size = 0x1000, scoped, tag = 'scratch operand']
  %s0 = inlined_call_operand.vmem [shape: s32[9,1], index: 0, kind: input, shape index: {}]
  %s1 = inlined_call_operand.hbm [shape: f32[208,256], index: 1, kind: input, shape index: {}]
  %s2 = inlined_call_operand.vmem [shape: f32[2,64], index: 2, kind: input, shape index: {}]
  %s3 = inlined_call_operand.hbm [shape: f32[8,128], index: 3, kind: output, shape index: {0}]
  %s4 = inlined_call_operand.vmem [shape: f32[2,64], index: 4, kind: output, shape index: {1}]
  %5 = xla_tuple %s3, %s4
  %s6 = sld [smem:[#allocation0]]
  $region34: #{poetry_creator_forward.1} parent=0
    _
  %s8 = ssub.s32 1, %s6
  %s9 = scalar_select 0, %s8, %s6
  $region1: #{poetry_creator_forward.1} parent=0
    #allocation3 [shape = 'u8[212992]{0}', space=vmem, size = 0x34000, scoped, tag = 'input window, operand 1, single buffered']
    #allocation4 [shape = 's32[1]{0}', space=sflag, size = 0x4, scoped, tag = 'scoped memory for poetry_creator_forward.1']
    #allocation5 [shape = 's32[1]{0}', space=sflag, size = 0x4, scoped, tag = 'scoped memory for poetry_creator_forward.1']
    #allocation6 [shape = 'u8[4096]{0}', space=vmem, size = 0x1000, scoped, tag = 'output window, operand 0, single buffered']
    %10 = vsyncpa [#allocation4], 0
    %11 = vsyncpa [#allocation5], 0
    // Predicated region
    $region2: #{poetry_creator_forward.1} parent=1 // pred_check
      _
    $region3: #{poetry_creator_forward.1} parent=1 // pred_check_branch
      %13 = sbr.rel (0) target = $region5
    $region4: #{poetry_creator_forward.1} parent=1 // pred_region
      _
    $region5: #{poetry_creator_forward.1} parent=1 // pred_fallthru
      _
    // Predicated region
    $region6: #{poetry_creator_forward.1} parent=1 // pred_check
      _
    $region7: #{poetry_creator_forward.1} parent=1 // pred_check_branch
      %15 = sbr.rel (0) target = $region9
    $region8: #{poetry_creator_forward.1} parent=1 // pred_region
      %s17 = ssub.s32 6656, 6656
      %18 = vsyncadd [#allocation4], %s17
      %s19 = sshll.u32 [#allocation3], 4
      %s20 = int_to_ptr.vmem [resolvable:$true] %s19
      %25 = dma.hbm_to_vmem [thread:$0]  %s1, 6656, %s20, [#allocation4], 256, 256, 16
    $region9: #{poetry_creator_forward.1} parent=1 // pred_fallthru
      _
    // Predicated region
    $region10: #{poetry_creator_forward.1} parent=1 // pred_check
      _
    $region11: #{poetry_creator_forward.1} parent=1 // pred_check_branch
      %27 = sbr.rel (0) target = $region13
    $region12: #{poetry_creator_forward.1} parent=1 // pred_region
      _
    $region13: #{poetry_creator_forward.1} parent=1 // pred_fallthru
      _
    // Predicated region
    $region14: #{poetry_creator_forward.1} parent=1 // pred_check
      _
    $region15: #{poetry_creator_forward.1} parent=1 // pred_check_branch
      %29 = sbr.rel (0) target = $region17
    $region16: #{poetry_creator_forward.1} parent=1 // pred_region
      %30 = dma.done [#allocation4], 6656
    $region17: #{poetry_creator_forward.1} parent=1 // pred_fallthru
      _
    %v31 = vld [vmem:[#allocation3] sm:$0xff]
    %v32 = vld [vmem:[#allocation3 + $0x8] sm:$0xff]
    %v33 = vld [vmem:[#allocation3 + $0x10] sm:$0xff]
    %v34 = vld [vmem:[#allocation3 + $0x18] sm:$0xff]
    %v35 = vld [vmem:[#allocation3 + $0x20] sm:$0xff]
    %v36 = vld [vmem:[#allocation3 + $0x28] sm:$0xff]
    %v37 = vld [vmem:[#allocation3 + $0x30] sm:$0xff]
    %v38 = vld [vmem:[#allocation3 + $0x38] sm:$0xff]
    %v39 = vld [vmem:[#allocation3 + $0x40] sm:$0xff]
    %v40 = vld [vmem:[#allocation3 + $0x48] sm:$0xff]
    %v41 = vld [vmem:[#allocation3 + $0x50] sm:$0xff]
    %v42 = vld [vmem:[#allocation3 + $0x58] sm:$0xff]
    %v43 = vld [vmem:[#allocation3 + $0x60] sm:$0xff]
    %v44 = vld [vmem:[#allocation3 + $0x68] sm:$0xff]
    %v45 = vld [vmem:[#allocation3 + $0x70] sm:$0xff]
    %v46 = vld [vmem:[#allocation3 + $0x78] sm:$0xff]
    %v47 = vld [vmem:[#allocation3 + $0x80] sm:$0xff]
    %v48 = vld [vmem:[#allocation3 + $0x88] sm:$0xff]
    %v49 = vld [vmem:[#allocation3 + $0x90] sm:$0xff]
    %v50 = vld [vmem:[#allocation3 + $0x98] sm:$0xff]
    %v51 = vld [vmem:[#allocation3 + $0xa0] sm:$0xff]
    %v52 = vld [vmem:[#allocation3 + $0xa8] sm:$0xff]
    %v53 = vld [vmem:[#allocation3 + $0xb0] sm:$0xff]
    %v54 = vld [vmem:[#allocation3 + $0xb8] sm:$0xff]
    %v55 = vld [vmem:[#allocation3 + $0xc0] sm:$0xff]
    %v56 = vld [vmem:[#allocation3 + $0xc8] sm:$0xff]
    %v57 = vld [vmem:[#allocation3 + $0xd0] sm:$0xff]
    %v58 = vld [vmem:[#allocation3 + $0xd8] sm:$0xff]
    %v59 = vld [vmem:[#allocation3 + $0xe0] sm:$0xff]
    %v60 = vld [vmem:[#allocation3 + $0xe8] sm:$0xff]
    %v61 = vld [vmem:[#allocation3 + $0xf0] sm:$0xff]
    %v62 = vld [vmem:[#allocation3 + $0xf8] sm:$0xff]
    %v63 = vld [vmem:[#allocation3 + $0x100] sm:$0xff]
    %v64 = vld [vmem:[#allocation3 + $0x110] sm:$0xff]
    %v65 = vld [vmem:[#allocation3 + $0x120] sm:$0xff]
    %v66 = vld [vmem:[#allocation3 + $0x130] sm:$0xff]
    %v67 = vld [vmem:[#allocation3 + $0x140] sm:$0xff]
    %v68 = vld [vmem:[#allocation3 + $0x150] sm:$0xff]
    %v69 = vld [vmem:[#allocation3 + $0x160] sm:$0xff]
    %v70 = vld [vmem:[#allocation3 + $0x170] sm:$0xff]
    %s71 = scalar_lea.vmem [#allocation3], 384
    %v72 = vld [vmem:[%s71] ss:$8 sm:$0x3]
    %v73 = vld [vmem:[#allocation3 + $0x190] ss:$0 sm:$0xff]
    %v74 = vlaneseq
    %v75 = vand.u32 %v74, 127
    %v76 = vld [vmem:[%s0] sm:$0xff]
    %v77 = vld [vmem:[%s0 + $0x8] sm:$0x1]
    %78 = vset.pattern.permute.xlu0 0
    %79 = vperm.xlu0 %78, %v76
    %v80 = vpop.permute.xlu0 %79
    %81 = vset.pattern.permute.xlu0 0
    %82 = vperm.xlu0 %81, %v77
    %v83 = vpop.permute.xlu0 %82
    %vm84 = vcmp.eq.s32.totalorder %v75, %v80
    %vm85 = vcmp.eq.s32.totalorder %v75, %v83
    %v86 = vsel %vm84, 1, 0
    %v87 = vsel %vm85, 1, 0
    %v88 = vcvt.s32.f32 %v86
    %v89 = vcvt.s32.f32 %v87
    %v91 = vlaneseq
    %v92 = vshrl.u32 %v91, 7
    %v93 = vsub.s32 0, %v92
    %v94 = vrot.slane %v72, %v93
    %v95 = vlaneseq
    %v96 = vshrl.u32 %v95, 7
    %v97 = vsub.s32 1, %v96
    %v98 = vrot.slane %v72, %v97
    %vm101 = vcmask 523264
    %v103 = vsel %vm101, %v88, 0
    %v106 = vsel %vm101, %v89, 0
    %108 = vmatprep.subr.mxu0 %v48
    %109 = vmatpush1.msra.mxu0 %v47
    %110 = vmatprep.subr.mxu0 %v50
    %111 = vmatpush1.msra.mxu0 %v49
    %112 = vmatprep.subr.mxu0 %v52
    %113 = vmatpush1.msra.mxu0 %v51
    %114 = vmatprep.subr.mxu0 %v54
    %115 = vmatpush1.msra.mxu0 %v53
    %116 = vmatprep.subr.mxu0 %v56
    %117 = vmatpush1.msra.mxu0 %v55
    %118 = vmatprep.subr.mxu0 %v58
    %119 = vmatpush1.msra.mxu0 %v57
    %120 = vmatprep.subr.mxu0 %v60
    %121 = vmatpush1.msra.mxu0 %v59
    %122 = vmatprep.subr.mxu0 %v62
    %123 = vmatpush1.msra.mxu0 %v61
    %124 = vmatprep.subr.mxu0 0.0
    %125 = vmatpush1.msra.mxu0 0.0
    %126 = vmatprep.subr.mxu0 0.0
    %127 = vmatpush1.msra.mxu0 0.0
    %128 = vmatprep.subr.mxu0 0.0
    %129 = vmatpush1.msra.mxu0 0.0
    %130 = vmatprep.subr.mxu0 0.0
    %131 = vmatpush1.msra.mxu0 0.0
    %132 = vmatprep.subr.mxu0 0.0
    %133 = vmatpush1.msra.mxu0 0.0
    %134 = vmatprep.subr.mxu0 0.0
    %135 = vmatpush1.msra.mxu0 0.0
    %136 = vmatprep.subr.mxu0 0.0
    %137 = vmatpush1.msra.mxu0 0.0
    %138 = vmatprep.subr.mxu0 0.0
    %139 = vmatpush1.msra.mxu0 0.0
    %140 = vmatprep.subr.mxu0 0.0
    %141 = vmatpush1.msra.mxu0 0.0
    %142 = vmatprep.subr.mxu0 0.0
    %143 = vmatpush1.msra.mxu0 0.0
    %144 = vmatprep.subr.mxu0 0.0
    %145 = vmatpush1.msra.mxu0 0.0
    %146 = vmatprep.subr.mxu0 0.0
    %147 = vmatpush1.msra.mxu0 0.0
    %148 = vmatprep.subr.mxu0 0.0
    %149 = vmatpush1.msra.mxu0 0.0
    %150 = vmatprep.subr.mxu0 0.0
    %151 = vmatpush1.msra.mxu0 0.0
    %152 = vmatprep.subr.mxu0 0.0
    %153 = vmatpush1.msra.mxu0 0.0
    %154 = vmatprep.subr.mxu0 0.0
    %155 = vmatpush1.msra.mxu0 0.0
    %156 = vmatprep.subr.mxu0 0.0
    %157 = vmatpush1.msra.mxu0 0.0
    %158 = vmatprep.subr.mxu0 0.0
    %159 = vmatpush1.msra.mxu0 0.0
    %160 = vmatprep.subr.mxu0 0.0
    %161 = vmatpush1.msra.mxu0 0.0
    %162 = vmatprep.subr.mxu0 0.0
    %163 = vmatpush1.msra.mxu0 0.0
    %164 = vmatprep.subr.mxu0 0.0
    %165 = vmatpush1.msra.mxu0 0.0
    %166 = vmatprep.subr.mxu0 0.0
    %167 = vmatpush1.msra.mxu0 0.0
    %168 = vmatprep.subr.mxu0 0.0
    %169 = vmatpush1.msra.mxu0 0.0
    %170 = vmatprep.subr.mxu0 0.0
    %171 = vmatpush1.msra.mxu0 0.0
    %172 = vmatprep.mubr.f32.mxu0 0.0
    %173 = vmatmul.mubr.f32.gmra.mrb[0].mxu0 %v103
    %v174 = vpop.f32.mrb[0].mxu0
    %v175 = vadd.f32 %v94, %v174
    %v176 = vpop.f32.mrb[0].mxu0
    %v177 = vadd.f32 %v98, %v176
    %178 = vmatprep.mubr.f32.mxu0 0.0
    %179 = vmatmul.mubr.f32.gmra.mrb[0].mxu0 %v106
    %v180 = vpop.f32.mrb[0].mxu0
    %v181 = vadd.f32 %v94, %v180
    %v182 = vpop.f32.mrb[0].mxu0
    %v183 = vadd.f32 %v98, %v182
    %184 = vdwg.mxu0
    %vm185 = vcmp.lt.s32.totalorder %v75, 32
    %v186 = vld [vmem:[%s2] sm:$0x1]
    %v187 = vld [vmem:[%s2 + $0x1] sm:$0x1]
    %v189 = vsel %vm101, %v186, 0
    %191 = vmatprep.subr.mxu0 %v32
    %192 = vmatpush1.msra.mxu0 %v31
    %193 = vmatprep.subr.mxu0 %v34
    %194 = vmatpush1.msra.mxu0 %v33
    %195 = vmatprep.subr.mxu0 %v36
    %196 = vmatpush1.msra.mxu0 %v35
    %197 = vmatprep.subr.mxu0 %v38
    %198 = vmatpush1.msra.mxu0 %v37
    %199 = vmatprep.subr.mxu0 %v40
    %200 = vmatpush1.msra.mxu0 %v39
    %201 = vmatprep.subr.mxu0 %v42
    %202 = vmatpush1.msra.mxu0 %v41
    %203 = vmatprep.subr.mxu0 %v44
    %204 = vmatpush1.msra.mxu0 %v43
    %205 = vmatprep.subr.mxu0 %v46
    %206 = vmatpush1.msra.mxu0 %v45
    %207 = vmatprep.subr.mxu0 0.0
    %208 = vmatpush1.msra.mxu0 0.0
    %209 = vmatprep.subr.mxu0 0.0
    %210 = vmatpush1.msra.mxu0 0.0
    %211 = vmatprep.subr.mxu0 0.0
    %212 = vmatpush1.msra.mxu0 0.0
    %213 = vmatprep.subr.mxu0 0.0
    %214 = vmatpush1.msra.mxu0 0.0
    %215 = vmatprep.subr.mxu0 0.0
    %216 = vmatpush1.msra.mxu0 0.0
    %217 = vmatprep.subr.mxu0 0.0
    %218 = vmatpush1.msra.mxu0 0.0
    %219 = vmatprep.subr.mxu0 0.0
    %220 = vmatpush1.msra.mxu0 0.0
    %221 = vmatprep.subr.mxu0 0.0
    %222 = vmatpush1.msra.mxu0 0.0
    %223 = vmatprep.subr.mxu0 0.0
    %224 = vmatpush1.msra.mxu0 0.0
    %225 = vmatprep.subr.mxu0 0.0
    %226 = vmatpush1.msra.mxu0 0.0
    %227 = vmatprep.subr.mxu0 0.0
    %228 = vmatpush1.msra.mxu0 0.0
    %229 = vmatprep.subr.mxu0 0.0
    %230 = vmatpush1.msra.mxu0 0.0
    %231 = vmatprep.subr.mxu0 0.0
    %232 = vmatpush1.msra.mxu0 0.0
    %233 = vmatprep.subr.mxu0 0.0
    %234 = vmatpush1.msra.mxu0 0.0
    %235 = vmatprep.subr.mxu0 0.0
    %236 = vmatpush1.msra.mxu0 0.0
    %237 = vmatprep.subr.mxu0 0.0
    %238 = vmatpush1.msra.mxu0 0.0
    %239 = vmatprep.subr.mxu0 0.0
    %240 = vmatpush1.msra.mxu0 0.0
    %241 = vmatprep.subr.mxu0 0.0
    %242 = vmatpush1.msra.mxu0 0.0
    %243 = vmatprep.subr.mxu0 0.0
    %244 = vmatpush1.msra.mxu0 0.0
    %245 = vmatprep.subr.mxu0 0.0
    %246 = vmatpush1.msra.mxu0 0.0
    %247 = vmatprep.subr.mxu0 0.0
    %248 = vmatpush1.msra.mxu0 0.0
    %249 = vmatprep.subr.mxu0 0.0
    %250 = vmatpush1.msra.mxu0 0.0
    %251 = vmatprep.subr.mxu0 0.0
    %252 = vmatpush1.msra.mxu0 0.0
    %253 = vmatprep.subr.mxu0 0.0
    %254 = vmatpush1.msra.mxu0 0.0
    %255 = vmatprep.mubr.f32.mxu0 0.0
    %256 = vmatmul.mubr.f32.gmra.mrb[0].mxu0 %v189
    %v257 = vpop.f32.mrb[0].mxu0
    %v258 = vadd.f32 %v175, %v257
    %v259 = vpop.f32.mrb[0].mxu0
    %v260 = vadd.f32 %v177, %v259
    %261 = vdwg.mxu0
    %v262 = vxor.u32 %v258, 2147483648
    %v263 = vxor.u32 %v260, 2147483648
    %v264 = vmul.f32 %v262, 1.442695
    %v265 = vpow.pop %v264
    %v266 = vmul.f32 %v263, 1.442695
    %v267 = vpow.pop %v266
    %v268 = vadd.f32 %v265, 1.0
    %v269 = vadd.f32 %v267, 1.0
    %v270 = vrcp.pop %v268
    %v271 = vmul.f32 1.0, %v270
    %v272 = vrcp.pop %v269
    %v273 = vmul.f32 1.0, %v272
    %v274 = vtanh.pop %v260
    %276 = vrot.lane.b32.xlu0 %v187, 64
    %v277 = vpop.permute.xlu0 %276
    %v279 = vmul.f32 %v271, %v277
    %v280 = vmul.f32 %v271, %v274
    %282 = vrot.lane.b32.xlu0 %v280, 64
    %v283 = vpop.permute.xlu0 %282
    %v285 = vadd.f32 %v279, %v283
    %v286 = vtanh.pop %v285
    %v287 = vmul.f32 %v273, %v286
    %289 = vrot.lane.b32.xlu0 %v285, 64
    %v290 = vpop.permute.xlu0 %289
    %v292 = vsel %vm185, %v290, %v187
    %294 = vrot.lane.b32.xlu0 %v287, 64
    %v295 = vpop.permute.xlu0 %294
    %v297 = vsel %vm185, %v295, %v186
    %v300 = vrot.slane %v175, 1
    %v301 = vrot.slane %v177, 1
    %v305 = vsel %vm101, %v297, 0
    %307 = vmatprep.subr.mxu0 %v32
    %308 = vmatpush1.msra.mxu0 %v31
    %309 = vmatprep.subr.mxu0 %v34
    %310 = vmatpush1.msra.mxu0 %v33
    %311 = vmatprep.subr.mxu0 %v36
    %312 = vmatpush1.msra.mxu0 %v35
    %313 = vmatprep.subr.mxu0 %v38
    %314 = vmatpush1.msra.mxu0 %v37
    %315 = vmatprep.subr.mxu0 %v40
    %316 = vmatpush1.msra.mxu0 %v39
    %317 = vmatprep.subr.mxu0 %v42
    %318 = vmatpush1.msra.mxu0 %v41
    %319 = vmatprep.subr.mxu0 %v44
    %320 = vmatpush1.msra.mxu0 %v43
    %321 = vmatprep.subr.mxu0 %v46
    %322 = vmatpush1.msra.mxu0 %v45
    %323 = vmatprep.subr.mxu0 0.0
    %324 = vmatpush1.msra.mxu0 0.0
    %325 = vmatprep.subr.mxu0 0.0
    %326 = vmatpush1.msra.mxu0 0.0
    %327 = vmatprep.subr.mxu0 0.0
    %328 = vmatpush1.msra.mxu0 0.0
    %329 = vmatprep.subr.mxu0 0.0
    %330 = vmatpush1.msra.mxu0 0.0
    %331 = vmatprep.subr.mxu0 0.0
    %332 = vmatpush1.msra.mxu0 0.0
    %333 = vmatprep.subr.mxu0 0.0
    %334 = vmatpush1.msra.mxu0 0.0
    %335 = vmatprep.subr.mxu0 0.0
    %336 = vmatpush1.msra.mxu0 0.0
    %337 = vmatprep.subr.mxu0 0.0
    %338 = vmatpush1.msra.mxu0 0.0
    %339 = vmatprep.subr.mxu0 0.0
    %340 = vmatpush1.msra.mxu0 0.0
    %341 = vmatprep.subr.mxu0 0.0
    %342 = vmatpush1.msra.mxu0 0.0
    %343 = vmatprep.subr.mxu0 0.0
    %344 = vmatpush1.msra.mxu0 0.0
    %345 = vmatprep.subr.mxu0 0.0
    %346 = vmatpush1.msra.mxu0 0.0
    %347 = vmatprep.subr.mxu0 0.0
    %348 = vmatpush1.msra.mxu0 0.0
    %349 = vmatprep.subr.mxu0 0.0
    %350 = vmatpush1.msra.mxu0 0.0
    %351 = vmatprep.subr.mxu0 0.0
    %352 = vmatpush1.msra.mxu0 0.0
    %353 = vmatprep.subr.mxu0 0.0
    %354 = vmatpush1.msra.mxu0 0.0
    %355 = vmatprep.subr.mxu0 0.0
    %356 = vmatpush1.msra.mxu0 0.0
    %357 = vmatprep.subr.mxu0 0.0
    %358 = vmatpush1.msra.mxu0 0.0
    %359 = vmatprep.subr.mxu0 0.0
    %360 = vmatpush1.msra.mxu0 0.0
    %361 = vmatprep.subr.mxu0 0.0
    %362 = vmatpush1.msra.mxu0 0.0
    %363 = vmatprep.subr.mxu0 0.0
    %364 = vmatpush1.msra.mxu0 0.0
    %365 = vmatprep.subr.mxu0 0.0
    %366 = vmatpush1.msra.mxu0 0.0
    %367 = vmatprep.subr.mxu0 0.0
    %368 = vmatpush1.msra.mxu0 0.0
    %369 = vmatprep.subr.mxu0 0.0
    %370 = vmatpush1.msra.mxu0 0.0
    %371 = vmatprep.mubr.f32.mxu0 0.0
    %372 = vmatmul.mubr.f32.gmra.mrb[0].mxu0 %v305
    %v373 = vpop.f32.mrb[0].mxu0
    %v374 = vadd.f32 %v300, %v373
    %v375 = vpop.f32.mrb[0].mxu0
    %v376 = vadd.f32 %v301, %v375
    %377 = vdwg.mxu0
    %v378 = vxor.u32 %v374, 2147483648
    %v379 = vxor.u32 %v376, 2147483648
    %v380 = vmul.f32 %v378, 1.442695
    %v381 = vpow.pop %v380
    %v382 = vmul.f32 %v379, 1.442695
    %v383 = vpow.pop %v382
    %v384 = vadd.f32 %v381, 1.0
    %v385 = vadd.f32 %v383, 1.0
    %v386 = vrcp.pop %v384
    %v387 = vmul.f32 1.0, %v386
    %v388 = vrcp.pop %v385
    %v389 = vmul.f32 1.0, %v388
    %v390 = vtanh.pop %v376
    %392 = vrot.lane.b32.xlu0 %v292, 64
    %v393 = vpop.permute.xlu0 %392
    %v395 = vmul.f32 %v387, %v393
    %v396 = vmul.f32 %v387, %v390
    %398 = vrot.lane.b32.xlu0 %v396, 64
    %v399 = vpop.permute.xlu0 %398
    %v401 = vadd.f32 %v395, %v399
    %v402 = vtanh.pop %v401
    %v403 = vmul.f32 %v389, %v402
    %405 = vrot.lane.b32.xlu0 %v403, 64
    %v406 = vpop.permute.xlu0 %405
    %vm408 = vcmask 516096
    %409 = vst.msk [vmem:[#allocation2] sm:$0x1] %vm408, %v406
    %v410 = vrot.slane %v175, 2
    %v411 = vrot.slane %v177, 2
    %v414 = vsel %vm101, %v406, 0
    %416 = vmatprep.subr.mxu0 %v32
    %417 = vmatpush1.msra.mxu0 %v31
    %418 = vmatprep.subr.mxu0 %v34
    %419 = vmatpush1.msra.mxu0 %v33
    %420 = vmatprep.subr.mxu0 %v36
    %421 = vmatpush1.msra.mxu0 %v35
    %422 = vmatprep.subr.mxu0 %v38
    %423 = vmatpush1.msra.mxu0 %v37
    %424 = vmatprep.subr.mxu0 %v40
    %425 = vmatpush1.msra.mxu0 %v39
    %426 = vmatprep.subr.mxu0 %v42
    %427 = vmatpush1.msra.mxu0 %v41
    %428 = vmatprep.subr.mxu0 %v44
    %429 = vmatpush1.msra.mxu0 %v43
    %430 = vmatprep.subr.mxu0 %v46
    %431 = vmatpush1.msra.mxu0 %v45
    %432 = vmatprep.subr.mxu0 0.0
    %433 = vmatpush1.msra.mxu0 0.0
    %434 = vmatprep.subr.mxu0 0.0
    %435 = vmatpush1.msra.mxu0 0.0
    %436 = vmatprep.subr.mxu0 0.0
    %437 = vmatpush1.msra.mxu0 0.0
    %438 = vmatprep.subr.mxu0 0.0
    %439 = vmatpush1.msra.mxu0 0.0
    %440 = vmatprep.subr.mxu0 0.0
    %441 = vmatpush1.msra.mxu0 0.0
    %442 = vmatprep.subr.mxu0 0.0
    %443 = vmatpush1.msra.mxu0 0.0
    %444 = vmatprep.subr.mxu0 0.0
    %445 = vmatpush1.msra.mxu0 0.0
    %446 = vmatprep.subr.mxu0 0.0
    %447 = vmatpush1.msra.mxu0 0.0
    %448 = vmatprep.subr.mxu0 0.0
    %449 = vmatpush1.msra.mxu0 0.0
    %450 = vmatprep.subr.mxu0 0.0
    %451 = vmatpush1.msra.mxu0 0.0
    %452 = vmatprep.subr.mxu0 0.0
    %453 = vmatpush1.msra.mxu0 0.0
    %454 = vmatprep.subr.mxu0 0.0
    %455 = vmatpush1.msra.mxu0 0.0
    %456 = vmatprep.subr.mxu0 0.0
    %457 = vmatpush1.msra.mxu0 0.0
    %458 = vmatprep.subr.mxu0 0.0
    %459 = vmatpush1.msra.mxu0 0.0
    %460 = vmatprep.subr.mxu0 0.0
    %461 = vmatpush1.msra.mxu0 0.0
    %462 = vmatprep.subr.mxu0 0.0
    %463 = vmatpush1.msra.mxu0 0.0
    %464 = vmatprep.subr.mxu0 0.0
    %465 = vmatpush1.msra.mxu0 0.0
    %466 = vmatprep.subr.mxu0 0.0
    %467 = vmatpush1.msra.mxu0 0.0
    %468 = vmatprep.subr.mxu0 0.0
    %469 = vmatpush1.msra.mxu0 0.0
    %470 = vmatprep.subr.mxu0 0.0
    %471 = vmatpush1.msra.mxu0 0.0
    %472 = vmatprep.subr.mxu0 0.0
    %473 = vmatpush1.msra.mxu0 0.0
    %474 = vmatprep.subr.mxu0 0.0
    %475 = vmatpush1.msra.mxu0 0.0
    %476 = vmatprep.subr.mxu0 0.0
    %477 = vmatpush1.msra.mxu0 0.0
    %478 = vmatprep.subr.mxu0 0.0
    %479 = vmatpush1.msra.mxu0 0.0
    %480 = vmatprep.mubr.f32.mxu0 0.0
    %481 = vmatmul.mubr.f32.gmra.mrb[0].mxu0 %v414
    %v482 = vpop.f32.mrb[0].mxu0
    %v483 = vadd.f32 %v410, %v482
    %v484 = vpop.f32.mrb[0].mxu0
    %v485 = vadd.f32 %v411, %v484
    %486 = vdwg.mxu0
    %v487 = vxor.u32 %v483, 2147483648
    %v488 = vxor.u32 %v485, 2147483648
    %v489 = vmul.f32 %v487, 1.442695
    %v490 = vpow.pop %v489
    %v491 = vmul.f32 %v488, 1.442695
    %v492 = vpow.pop %v491
    %v493 = vadd.f32 %v490, 1.0
    %v494 = vadd.f32 %v492, 1.0
    %v495 = vrcp.pop %v493
    %v496 = vmul.f32 1.0, %v495
    %v497 = vrcp.pop %v494
    %v498 = vmul.f32 1.0, %v497
    %v499 = vtanh.pop %v485
    %v500 = vmul.f32 %v496, %v401
    %v501 = vmul.f32 %v496, %v499
    %503 = vrot.lane.b32.xlu0 %v501, 64
    %v504 = vpop.permute.xlu0 %503
    %v506 = vadd.f32 %v500, %v504
    %v507 = vtanh.pop %v506
    %v508 = vmul.f32 %v498, %v507
    %510 = vrot.lane.b32.xlu0 %v508, 64
    %v511 = vpop.permute.xlu0 %510
    %513 = vst.msk [vmem:[#allocation2 + $0x1] sm:$0x1] %vm408, %v511
    %v514 = vrot.slane %v175, 3
    %v515 = vrot.slane %v177, 3
    %v518 = vsel %vm101, %v511, 0
    %520 = vmatprep.subr.mxu0 %v32
    %521 = vmatpush1.msra.mxu0 %v31
    %522 = vmatprep.subr.mxu0 %v34
    %523 = vmatpush1.msra.mxu0 %v33
    %524 = vmatprep.subr.mxu0 %v36
    %525 = vmatpush1.msra.mxu0 %v35
    %526 = vmatprep.subr.mxu0 %v38
    %527 = vmatpush1.msra.mxu0 %v37
    %528 = vmatprep.subr.mxu0 %v40
    %529 = vmatpush1.msra.mxu0 %v39
    %530 = vmatprep.subr.mxu0 %v42
    %531 = vmatpush1.msra.mxu0 %v41
    %532 = vmatprep.subr.mxu0 %v44
    %533 = vmatpush1.msra.mxu0 %v43
    %534 = vmatprep.subr.mxu0 %v46
    %535 = vmatpush1.msra.mxu0 %v45
    %536 = vmatprep.subr.mxu0 0.0
    %537 = vmatpush1.msra.mxu0 0.0
    %538 = vmatprep.subr.mxu0 0.0
    %539 = vmatpush1.msra.mxu0 0.0
    %540 = vmatprep.subr.mxu0 0.0
    %541 = vmatpush1.msra.mxu0 0.0
    %542 = vmatprep.subr.mxu0 0.0
    %543 = vmatpush1.msra.mxu0 0.0
    %544 = vmatprep.subr.mxu0 0.0
    %545 = vmatpush1.msra.mxu0 0.0
    %546 = vmatprep.subr.mxu0 0.0
    %547 = vmatpush1.msra.mxu0 0.0
    %548 = vmatprep.subr.mxu0 0.0
    %549 = vmatpush1.msra.mxu0 0.0
    %550 = vmatprep.subr.mxu0 0.0
    %551 = vmatpush1.msra.mxu0 0.0
    %552 = vmatprep.subr.mxu0 0.0
    %553 = vmatpush1.msra.mxu0 0.0
    %554 = vmatprep.subr.mxu0 0.0
    %555 = vmatpush1.msra.mxu0 0.0
    %556 = vmatprep.subr.mxu0 0.0
    %557 = vmatpush1.msra.mxu0 0.0
    %558 = vmatprep.subr.mxu0 0.0
    %559 = vmatpush1.msra.mxu0 0.0
    %560 = vmatprep.subr.mxu0 0.0
    %561 = vmatpush1.msra.mxu0 0.0
    %562 = vmatprep.subr.mxu0 0.0
    %563 = vmatpush1.msra.mxu0 0.0
    %564 = vmatprep.subr.mxu0 0.0
    %565 = vmatpush1.msra.mxu0 0.0
    %566 = vmatprep.subr.mxu0 0.0
    %567 = vmatpush1.msra.mxu0 0.0
    %568 = vmatprep.subr.mxu0 0.0
    %569 = vmatpush1.msra.mxu0 0.0
    %570 = vmatprep.subr.mxu0 0.0
    %571 = vmatpush1.msra.mxu0 0.0
    %572 = vmatprep.subr.mxu0 0.0
    %573 = vmatpush1.msra.mxu0 0.0
    %574 = vmatprep.subr.mxu0 0.0
    %575 = vmatpush1.msra.mxu0 0.0
    %576 = vmatprep.subr.mxu0 0.0
    %577 = vmatpush1.msra.mxu0 0.0
    %578 = vmatprep.subr.mxu0 0.0
    %579 = vmatpush1.msra.mxu0 0.0
    %580 = vmatprep.subr.mxu0 0.0
    %581 = vmatpush1.msra.mxu0 0.0
    %582 = vmatprep.subr.mxu0 0.0
    %583 = vmatpush1.msra.mxu0 0.0
    %584 = vmatprep.mubr.f32.mxu0 0.0
    %585 = vmatmul.mubr.f32.gmra.mrb[0].mxu0 %v518
    %v586 = vpop.f32.mrb[0].mxu0
    %v587 = vadd.f32 %v514, %v586
    %v588 = vpop.f32.mrb[0].mxu0
    %v589 = vadd.f32 %v515, %v588
    %590 = vdwg.mxu0
    %v591 = vxor.u32 %v587, 2147483648
    %v592 = vxor.u32 %v589, 2147483648
    %v593 = vmul.f32 %v591, 1.442695
    %v594 = vpow.pop %v593
    %v595 = vmul.f32 %v592, 1.442695
    %v596 = vpow.pop %v595
    %v597 = vadd.f32 %v594, 1.0
    %v598 = vadd.f32 %v596, 1.0
    %v599 = vrcp.pop %v597
    %v600 = vmul.f32 1.0, %v599
    %v601 = vrcp.pop %v598
    %v602 = vmul.f32 1.0, %v601
    %v603 = vtanh.pop %v589
    %v604 = vmul.f32 %v600, %v506
    %v605 = vmul.f32 %v600, %v603
    %607 = vrot.lane.b32.xlu0 %v605, 64
    %v608 = vpop.permute.xlu0 %607
    %v610 = vadd.f32 %v604, %v608
    %v611 = vtanh.pop %v610
    %v612 = vmul.f32 %v602, %v611
    %614 = vrot.lane.b32.xlu0 %v612, 64
    %v615 = vpop.permute.xlu0 %614
    %617 = vst.msk [vmem:[#allocation2 + $0x2] sm:$0x1] %vm408, %v615
    %v618 = vrot.slane %v175, 4
    %v619 = vrot.slane %v177, 4
    %v622 = vsel %vm101, %v615, 0
    %624 = vmatprep.subr.mxu0 %v32
    %625 = vmatpush1.msra.mxu0 %v31
    %626 = vmatprep.subr.mxu0 %v34
    %627 = vmatpush1.msra.mxu0 %v33
    %628 = vmatprep.subr.mxu0 %v36
    %629 = vmatpush1.msra.mxu0 %v35
    %630 = vmatprep.subr.mxu0 %v38
    %631 = vmatpush1.msra.mxu0 %v37
    %632 = vmatprep.subr.mxu0 %v40
    %633 = vmatpush1.msra.mxu0 %v39
    %634 = vmatprep.subr.mxu0 %v42
    %635 = vmatpush1.msra.mxu0 %v41
    %636 = vmatprep.subr.mxu0 %v44
    %637 = vmatpush1.msra.mxu0 %v43
    %638 = vmatprep.subr.mxu0 %v46
    %639 = vmatpush1.msra.mxu0 %v45
    %640 = vmatprep.subr.mxu0 0.0
    %641 = vmatpush1.msra.mxu0 0.0
    %642 = vmatprep.subr.mxu0 0.0
    %643 = vmatpush1.msra.mxu0 0.0
    %644 = vmatprep.subr.mxu0 0.0
    %645 = vmatpush1.msra.mxu0 0.0
    %646 = vmatprep.subr.mxu0 0.0
    %647 = vmatpush1.msra.mxu0 0.0
    %648 = vmatprep.subr.mxu0 0.0
    %649 = vmatpush1.msra.mxu0 0.0
    %650 = vmatprep.subr.mxu0 0.0
    %651 = vmatpush1.msra.mxu0 0.0
    %652 = vmatprep.subr.mxu0 0.0
    %653 = vmatpush1.msra.mxu0 0.0
    %654 = vmatprep.subr.mxu0 0.0
    %655 = vmatpush1.msra.mxu0 0.0
    %656 = vmatprep.subr.mxu0 0.0
    %657 = vmatpush1.msra.mxu0 0.0
    %658 = vmatprep.subr.mxu0 0.0
    %659 = vmatpush1.msra.mxu0 0.0
    %660 = vmatprep.subr.mxu0 0.0
    %661 = vmatpush1.msra.mxu0 0.0
    %662 = vmatprep.subr.mxu0 0.0
    %663 = vmatpush1.msra.mxu0 0.0
    %664 = vmatprep.subr.mxu0 0.0
    %665 = vmatpush1.msra.mxu0 0.0
    %666 = vmatprep.subr.mxu0 0.0
    %667 = vmatpush1.msra.mxu0 0.0
    %668 = vmatprep.subr.mxu0 0.0
    %669 = vmatpush1.msra.mxu0 0.0
    %670 = vmatprep.subr.mxu0 0.0
    %671 = vmatpush1.msra.mxu0 0.0
    %672 = vmatprep.subr.mxu0 0.0
    %673 = vmatpush1.msra.mxu0 0.0
    %674 = vmatprep.subr.mxu0 0.0
    %675 = vmatpush1.msra.mxu0 0.0
    %676 = vmatprep.subr.mxu0 0.0
    %677 = vmatpush1.msra.mxu0 0.0
    %678 = vmatprep.subr.mxu0 0.0
    %679 = vmatpush1.msra.mxu0 0.0
    %680 = vmatprep.subr.mxu0 0.0
    %681 = vmatpush1.msra.mxu0 0.0
    %682 = vmatprep.subr.mxu0 0.0
    %683 = vmatpush1.msra.mxu0 0.0
    %684 = vmatprep.subr.mxu0 0.0
    %685 = vmatpush1.msra.mxu0 0.0
    %686 = vmatprep.subr.mxu0 0.0
    %687 = vmatpush1.msra.mxu0 0.0
    %688 = vmatprep.mubr.f32.mxu0 0.0
    %689 = vmatmul.mubr.f32.gmra.mrb[0].mxu0 %v622
    %v690 = vpop.f32.mrb[0].mxu0
    %v691 = vadd.f32 %v618, %v690
    %v692 = vpop.f32.mrb[0].mxu0
    %v693 = vadd.f32 %v619, %v692
    %694 = vdwg.mxu0
    %v695 = vxor.u32 %v691, 2147483648
    %v696 = vxor.u32 %v693, 2147483648
    %v697 = vmul.f32 %v695, 1.442695
    %v698 = vpow.pop %v697
    %v699 = vmul.f32 %v696, 1.442695
    %v700 = vpow.pop %v699
    %v701 = vadd.f32 %v698, 1.0
    %v702 = vadd.f32 %v700, 1.0
    %v703 = vrcp.pop %v701
    %v704 = vmul.f32 1.0, %v703
    %v705 = vrcp.pop %v702
    %v706 = vmul.f32 1.0, %v705
    %v707 = vtanh.pop %v693
    %v708 = vmul.f32 %v704, %v610
    %v709 = vmul.f32 %v704, %v707
    %711 = vrot.lane.b32.xlu0 %v709, 64
    %v712 = vpop.permute.xlu0 %711
    %v714 = vadd.f32 %v708, %v712
    %v715 = vtanh.pop %v714
    %v716 = vmul.f32 %v706, %v715
    %718 = vrot.lane.b32.xlu0 %v716, 64
    %v719 = vpop.permute.xlu0 %718
    %721 = vst.msk [vmem:[#allocation2 + $0x3] sm:$0x1] %vm408, %v719
    %v722 = vrot.slane %v175, 5
    %v723 = vrot.slane %v177, 5
    %v726 = vsel %vm101, %v719, 0
    %728 = vmatprep.subr.mxu0 %v32
    %729 = vmatpush1.msra.mxu0 %v31
    %730 = vmatprep.subr.mxu0 %v34
    %731 = vmatpush1.msra.mxu0 %v33
    %732 = vmatprep.subr.mxu0 %v36
    %733 = vmatpush1.msra.mxu0 %v35
    %734 = vmatprep.subr.mxu0 %v38
    %735 = vmatpush1.msra.mxu0 %v37
    %736 = vmatprep.subr.mxu0 %v40
    %737 = vmatpush1.msra.mxu0 %v39
    %738 = vmatprep.subr.mxu0 %v42
    %739 = vmatpush1.msra.mxu0 %v41
    %740 = vmatprep.subr.mxu0 %v44
    %741 = vmatpush1.msra.mxu0 %v43
    %742 = vmatprep.subr.mxu0 %v46
    %743 = vmatpush1.msra.mxu0 %v45
    %744 = vmatprep.subr.mxu0 0.0
    %745 = vmatpush1.msra.mxu0 0.0
    %746 = vmatprep.subr.mxu0 0.0
    %747 = vmatpush1.msra.mxu0 0.0
    %748 = vmatprep.subr.mxu0 0.0
    %749 = vmatpush1.msra.mxu0 0.0
    %750 = vmatprep.subr.mxu0 0.0
    %751 = vmatpush1.msra.mxu0 0.0
    %752 = vmatprep.subr.mxu0 0.0
    %753 = vmatpush1.msra.mxu0 0.0
    %754 = vmatprep.subr.mxu0 0.0
    %755 = vmatpush1.msra.mxu0 0.0
    %756 = vmatprep.subr.mxu0 0.0
    %757 = vmatpush1.msra.mxu0 0.0
    %758 = vmatprep.subr.mxu0 0.0
    %759 = vmatpush1.msra.mxu0 0.0
    %760 = vmatprep.subr.mxu0 0.0
    %761 = vmatpush1.msra.mxu0 0.0
    %762 = vmatprep.subr.mxu0 0.0
    %763 = vmatpush1.msra.mxu0 0.0
    %764 = vmatprep.subr.mxu0 0.0
    %765 = vmatpush1.msra.mxu0 0.0
    %766 = vmatprep.subr.mxu0 0.0
    %767 = vmatpush1.msra.mxu0 0.0
    %768 = vmatprep.subr.mxu0 0.0
    %769 = vmatpush1.msra.mxu0 0.0
    %770 = vmatprep.subr.mxu0 0.0
    %771 = vmatpush1.msra.mxu0 0.0
    %772 = vmatprep.subr.mxu0 0.0
    %773 = vmatpush1.msra.mxu0 0.0
    %774 = vmatprep.subr.mxu0 0.0
    %775 = vmatpush1.msra.mxu0 0.0
    %776 = vmatprep.subr.mxu0 0.0
    %777 = vmatpush1.msra.mxu0 0.0
    %778 = vmatprep.subr.mxu0 0.0
    %779 = vmatpush1.msra.mxu0 0.0
    %780 = vmatprep.subr.mxu0 0.0
    %781 = vmatpush1.msra.mxu0 0.0
    %782 = vmatprep.subr.mxu0 0.0
    %783 = vmatpush1.msra.mxu0 0.0
    %784 = vmatprep.subr.mxu0 0.0
    %785 = vmatpush1.msra.mxu0 0.0
    %786 = vmatprep.subr.mxu0 0.0
    %787 = vmatpush1.msra.mxu0 0.0
    %788 = vmatprep.subr.mxu0 0.0
    %789 = vmatpush1.msra.mxu0 0.0
    %790 = vmatprep.subr.mxu0 0.0
    %791 = vmatpush1.msra.mxu0 0.0
    %792 = vmatprep.mubr.f32.mxu0 0.0
    %793 = vmatmul.mubr.f32.gmra.mrb[0].mxu0 %v726
    %v794 = vpop.f32.mrb[0].mxu0
    %v795 = vadd.f32 %v722, %v794
    %v796 = vpop.f32.mrb[0].mxu0
    %v797 = vadd.f32 %v723, %v796
    %798 = vdwg.mxu0
    %v799 = vxor.u32 %v795, 2147483648
    %v800 = vxor.u32 %v797, 2147483648
    %v801 = vmul.f32 %v799, 1.442695
    %v802 = vpow.pop %v801
    %v803 = vmul.f32 %v800, 1.442695
    %v804 = vpow.pop %v803
    %v805 = vadd.f32 %v802, 1.0
    %v806 = vadd.f32 %v804, 1.0
    %v807 = vrcp.pop %v805
    %v808 = vmul.f32 1.0, %v807
    %v809 = vrcp.pop %v806
    %v810 = vmul.f32 1.0, %v809
    %v811 = vtanh.pop %v797
    %v812 = vmul.f32 %v808, %v714
    %v813 = vmul.f32 %v808, %v811
    %815 = vrot.lane.b32.xlu0 %v813, 64
    %v816 = vpop.permute.xlu0 %815
    %v818 = vadd.f32 %v812, %v816
    %v819 = vtanh.pop %v818
    %v820 = vmul.f32 %v810, %v819
    %822 = vrot.lane.b32.xlu0 %v820, 64
    %v823 = vpop.permute.xlu0 %822
    %825 = vst.msk [vmem:[#allocation2 + $0x4] sm:$0x1] %vm408, %v823
    %v826 = vrot.slane %v175, 6
    %v827 = vrot.slane %v177, 6
    %v830 = vsel %vm101, %v823, 0
    %832 = vmatprep.subr.mxu0 %v32
    %833 = vmatpush1.msra.mxu0 %v31
    %834 = vmatprep.subr.mxu0 %v34
    %835 = vmatpush1.msra.mxu0 %v33
    %836 = vmatprep.subr.mxu0 %v36
    %837 = vmatpush1.msra.mxu0 %v35
    %838 = vmatprep.subr.mxu0 %v38
    %839 = vmatpush1.msra.mxu0 %v37
    %840 = vmatprep.subr.mxu0 %v40
    %841 = vmatpush1.msra.mxu0 %v39
    %842 = vmatprep.subr.mxu0 %v42
    %843 = vmatpush1.msra.mxu0 %v41
    %844 = vmatprep.subr.mxu0 %v44
    %845 = vmatpush1.msra.mxu0 %v43
    %846 = vmatprep.subr.mxu0 %v46
    %847 = vmatpush1.msra.mxu0 %v45
    %848 = vmatprep.subr.mxu0 0.0
    %849 = vmatpush1.msra.mxu0 0.0
    %850 = vmatprep.subr.mxu0 0.0
    %851 = vmatpush1.msra.mxu0 0.0
    %852 = vmatprep.subr.mxu0 0.0
    %853 = vmatpush1.msra.mxu0 0.0
    %854 = vmatprep.subr.mxu0 0.0
    %855 = vmatpush1.msra.mxu0 0.0
    %856 = vmatprep.subr.mxu0 0.0
    %857 = vmatpush1.msra.mxu0 0.0
    %858 = vmatprep.subr.mxu0 0.0
    %859 = vmatpush1.msra.mxu0 0.0
    %860 = vmatprep.subr.mxu0 0.0
    %861 = vmatpush1.msra.mxu0 0.0
    %862 = vmatprep.subr.mxu0 0.0
    %863 = vmatpush1.msra.mxu0 0.0
    %864 = vmatprep.subr.mxu0 0.0
    %865 = vmatpush1.msra.mxu0 0.0
    %866 = vmatprep.subr.mxu0 0.0
    %867 = vmatpush1.msra.mxu0 0.0
    %868 = vmatprep.subr.mxu0 0.0
    %869 = vmatpush1.msra.mxu0 0.0
    %870 = vmatprep.subr.mxu0 0.0
    %871 = vmatpush1.msra.mxu0 0.0
    %872 = vmatprep.subr.mxu0 0.0
    %873 = vmatpush1.msra.mxu0 0.0
    %874 = vmatprep.subr.mxu0 0.0
    %875 = vmatpush1.msra.mxu0 0.0
    %876 = vmatprep.subr.mxu0 0.0
    %877 = vmatpush1.msra.mxu0 0.0
    %878 = vmatprep.subr.mxu0 0.0
    %879 = vmatpush1.msra.mxu0 0.0
    %880 = vmatprep.subr.mxu0 0.0
    %881 = vmatpush1.msra.mxu0 0.0
    %882 = vmatprep.subr.mxu0 0.0
    %883 = vmatpush1.msra.mxu0 0.0
    %884 = vmatprep.subr.mxu0 0.0
    %885 = vmatpush1.msra.mxu0 0.0
    %886 = vmatprep.subr.mxu0 0.0
    %887 = vmatpush1.msra.mxu0 0.0
    %888 = vmatprep.subr.mxu0 0.0
    %889 = vmatpush1.msra.mxu0 0.0
    %890 = vmatprep.subr.mxu0 0.0
    %891 = vmatpush1.msra.mxu0 0.0
    %892 = vmatprep.subr.mxu0 0.0
    %893 = vmatpush1.msra.mxu0 0.0
    %894 = vmatprep.subr.mxu0 0.0
    %895 = vmatpush1.msra.mxu0 0.0
    %896 = vmatprep.mubr.f32.mxu0 0.0
    %897 = vmatmul.mubr.f32.gmra.mrb[0].mxu0 %v830
    %v898 = vpop.f32.mrb[0].mxu0
    %v899 = vadd.f32 %v826, %v898
    %v900 = vpop.f32.mrb[0].mxu0
    %v901 = vadd.f32 %v827, %v900
    %902 = vdwg.mxu0
    %v903 = vxor.u32 %v899, 2147483648
    %v904 = vxor.u32 %v901, 2147483648
    %v905 = vmul.f32 %v903, 1.442695
    %v906 = vpow.pop %v905
    %v907 = vmul.f32 %v904, 1.442695
    %v908 = vpow.pop %v907
    %v909 = vadd.f32 %v906, 1.0
    %v910 = vadd.f32 %v908, 1.0
    %v911 = vrcp.pop %v909
    %v912 = vmul.f32 1.0, %v911
    %v913 = vrcp.pop %v910
    %v914 = vmul.f32 1.0, %v913
    %v915 = vtanh.pop %v901
    %v916 = vmul.f32 %v912, %v818
    %v917 = vmul.f32 %v912, %v915
    %919 = vrot.lane.b32.xlu0 %v917, 64
    %v920 = vpop.permute.xlu0 %919
    %v922 = vadd.f32 %v916, %v920
    %v923 = vtanh.pop %v922
    %v924 = vmul.f32 %v914, %v923
    %926 = vrot.lane.b32.xlu0 %v924, 64
    %v927 = vpop.permute.xlu0 %926
    %929 = vst.msk [vmem:[#allocation2 + $0x5] sm:$0x1] %vm408, %v927
    %v930 = vrot.slane %v175, 7
    %v931 = vrot.slane %v177, 7
    %v934 = vsel %vm101, %v927, 0
    %936 = vmatprep.subr.mxu0 %v32
    %937 = vmatpush1.msra.mxu0 %v31
    %938 = vmatprep.subr.mxu0 %v34
    %939 = vmatpush1.msra.mxu0 %v33
    %940 = vmatprep.subr.mxu0 %v36
    %941 = vmatpush1.msra.mxu0 %v35
    %942 = vmatprep.subr.mxu0 %v38
    %943 = vmatpush1.msra.mxu0 %v37
    %944 = vmatprep.subr.mxu0 %v40
    %945 = vmatpush1.msra.mxu0 %v39
    %946 = vmatprep.subr.mxu0 %v42
    %947 = vmatpush1.msra.mxu0 %v41
    %948 = vmatprep.subr.mxu0 %v44
    %949 = vmatpush1.msra.mxu0 %v43
    %950 = vmatprep.subr.mxu0 %v46
    %951 = vmatpush1.msra.mxu0 %v45
    %952 = vmatprep.subr.mxu0 0.0
    %953 = vmatpush1.msra.mxu0 0.0
    %954 = vmatprep.subr.mxu0 0.0
    %955 = vmatpush1.msra.mxu0 0.0
    %956 = vmatprep.subr.mxu0 0.0
    %957 = vmatpush1.msra.mxu0 0.0
    %958 = vmatprep.subr.mxu0 0.0
    %959 = vmatpush1.msra.mxu0 0.0
    %960 = vmatprep.subr.mxu0 0.0
    %961 = vmatpush1.msra.mxu0 0.0
    %962 = vmatprep.subr.mxu0 0.0
    %963 = vmatpush1.msra.mxu0 0.0
    %964 = vmatprep.subr.mxu0 0.0
    %965 = vmatpush1.msra.mxu0 0.0
    %966 = vmatprep.subr.mxu0 0.0
    %967 = vmatpush1.msra.mxu0 0.0
    %968 = vmatprep.subr.mxu0 0.0
    %969 = vmatpush1.msra.mxu0 0.0
    %970 = vmatprep.subr.mxu0 0.0
    %971 = vmatpush1.msra.mxu0 0.0
    %972 = vmatprep.subr.mxu0 0.0
    %973 = vmatpush1.msra.mxu0 0.0
    %974 = vmatprep.subr.mxu0 0.0
    %975 = vmatpush1.msra.mxu0 0.0
    %976 = vmatprep.subr.mxu0 0.0
    %977 = vmatpush1.msra.mxu0 0.0
    %978 = vmatprep.subr.mxu0 0.0
    %979 = vmatpush1.msra.mxu0 0.0
    %980 = vmatprep.subr.mxu0 0.0
    %981 = vmatpush1.msra.mxu0 0.0
    %982 = vmatprep.subr.mxu0 0.0
    %983 = vmatpush1.msra.mxu0 0.0
    %984 = vmatprep.subr.mxu0 0.0
    %985 = vmatpush1.msra.mxu0 0.0
    %986 = vmatprep.subr.mxu0 0.0
    %987 = vmatpush1.msra.mxu0 0.0
    %988 = vmatprep.subr.mxu0 0.0
    %989 = vmatpush1.msra.mxu0 0.0
    %990 = vmatprep.subr.mxu0 0.0
    %991 = vmatpush1.msra.mxu0 0.0
    %992 = vmatprep.subr.mxu0 0.0
    %993 = vmatpush1.msra.mxu0 0.0
    %994 = vmatprep.subr.mxu0 0.0
    %995 = vmatpush1.msra.mxu0 0.0
    %996 = vmatprep.subr.mxu0 0.0
    %997 = vmatpush1.msra.mxu0 0.0
    %998 = vmatprep.subr.mxu0 0.0
    %999 = vmatpush1.msra.mxu0 0.0
    %1000 = vmatprep.mubr.f32.mxu0 0.0
    %1001 = vmatmul.mubr.f32.gmra.mrb[0].mxu0 %v934
    %v1002 = vpop.f32.mrb[0].mxu0
    %v1003 = vadd.f32 %v930, %v1002
    %v1004 = vpop.f32.mrb[0].mxu0
    %v1005 = vadd.f32 %v931, %v1004
    %1006 = vdwg.mxu0
    %v1007 = vxor.u32 %v1003, 2147483648
    %v1008 = vxor.u32 %v1005, 2147483648
    %v1009 = vmul.f32 %v1007, 1.442695
    %v1010 = vpow.pop %v1009
    %v1011 = vmul.f32 %v1008, 1.442695
    %v1012 = vpow.pop %v1011
    %v1013 = vadd.f32 %v1010, 1.0
    %v1014 = vadd.f32 %v1012, 1.0
    %v1015 = vrcp.pop %v1013
    %v1016 = vmul.f32 1.0, %v1015
    %v1017 = vrcp.pop %v1014
    %v1018 = vmul.f32 1.0, %v1017
    %v1019 = vtanh.pop %v1005
    %v1020 = vmul.f32 %v1016, %v922
    %v1021 = vmul.f32 %v1016, %v1019
    %1023 = vrot.lane.b32.xlu0 %v1021, 64
    %v1024 = vpop.permute.xlu0 %1023
    %v1026 = vadd.f32 %v1020, %v1024
    %v1027 = vtanh.pop %v1026
    %v1028 = vmul.f32 %v1018, %v1027
    %1030 = vrot.lane.b32.xlu0 %v1028, 64
    %v1031 = vpop.permute.xlu0 %1030
    %1033 = vst.msk [vmem:[#allocation2 + $0x6] sm:$0x1] %vm408, %v1031
    %v1034 = vsel %vm101, %v1031, 0
    %1036 = vmatprep.subr.mxu0 %v32
    %1037 = vmatpush1.msra.mxu0 %v31
    %1038 = vmatprep.subr.mxu0 %v34
    %1039 = vmatpush1.msra.mxu0 %v33
    %1040 = vmatprep.subr.mxu0 %v36
    %1041 = vmatpush1.msra.mxu0 %v35
    %1042 = vmatprep.subr.mxu0 %v38
    %1043 = vmatpush1.msra.mxu0 %v37
    %1044 = vmatprep.subr.mxu0 %v40
    %1045 = vmatpush1.msra.mxu0 %v39
    %1046 = vmatprep.subr.mxu0 %v42
    %1047 = vmatpush1.msra.mxu0 %v41
    %1048 = vmatprep.subr.mxu0 %v44
    %1049 = vmatpush1.msra.mxu0 %v43
    %1050 = vmatprep.subr.mxu0 %v46
    %1051 = vmatpush1.msra.mxu0 %v45
    %1052 = vmatprep.subr.mxu0 0.0
    %1053 = vmatpush1.msra.mxu0 0.0
    %1054 = vmatprep.subr.mxu0 0.0
    %1055 = vmatpush1.msra.mxu0 0.0
    %1056 = vmatprep.subr.mxu0 0.0
    %1057 = vmatpush1.msra.mxu0 0.0
    %1058 = vmatprep.subr.mxu0 0.0
    %1059 = vmatpush1.msra.mxu0 0.0
    %1060 = vmatprep.subr.mxu0 0.0
    %1061 = vmatpush1.msra.mxu0 0.0
    %1062 = vmatprep.subr.mxu0 0.0
    %1063 = vmatpush1.msra.mxu0 0.0
    %1064 = vmatprep.subr.mxu0 0.0
    %1065 = vmatpush1.msra.mxu0 0.0
    %1066 = vmatprep.subr.mxu0 0.0
    %1067 = vmatpush1.msra.mxu0 0.0
    %1068 = vmatprep.subr.mxu0 0.0
    %1069 = vmatpush1.msra.mxu0 0.0
    %1070 = vmatprep.subr.mxu0 0.0
    %1071 = vmatpush1.msra.mxu0 0.0
    %1072 = vmatprep.subr.mxu0 0.0
    %1073 = vmatpush1.msra.mxu0 0.0
    %1074 = vmatprep.subr.mxu0 0.0
    %1075 = vmatpush1.msra.mxu0 0.0
    %1076 = vmatprep.subr.mxu0 0.0
    %1077 = vmatpush1.msra.mxu0 0.0
    %1078 = vmatprep.subr.mxu0 0.0
    %1079 = vmatpush1.msra.mxu0 0.0
    %1080 = vmatprep.subr.mxu0 0.0
    %1081 = vmatpush1.msra.mxu0 0.0
    %1082 = vmatprep.subr.mxu0 0.0
    %1083 = vmatpush1.msra.mxu0 0.0
    %1084 = vmatprep.subr.mxu0 0.0
    %1085 = vmatpush1.msra.mxu0 0.0
    %1086 = vmatprep.subr.mxu0 0.0
    %1087 = vmatpush1.msra.mxu0 0.0
    %1088 = vmatprep.subr.mxu0 0.0
    %1089 = vmatpush1.msra.mxu0 0.0
    %1090 = vmatprep.subr.mxu0 0.0
    %1091 = vmatpush1.msra.mxu0 0.0
    %1092 = vmatprep.subr.mxu0 0.0
    %1093 = vmatpush1.msra.mxu0 0.0
    %1094 = vmatprep.subr.mxu0 0.0
    %1095 = vmatpush1.msra.mxu0 0.0
    %1096 = vmatprep.subr.mxu0 0.0
    %1097 = vmatpush1.msra.mxu0 0.0
    %1098 = vmatprep.subr.mxu0 0.0
    %1099 = vmatpush1.msra.mxu0 0.0
    %1100 = vmatprep.mubr.f32.mxu0 0.0
    %1101 = vmatmul.mubr.f32.gmra.mrb[0].mxu0 %v1034
    %v1102 = vpop.f32.mrb[0].mxu0
    %v1103 = vadd.f32 %v181, %v1102
    %v1104 = vpop.f32.mrb[0].mxu0
    %v1105 = vadd.f32 %v183, %v1104
    %1106 = vdwg.mxu0
    %v1107 = vxor.u32 %v1103, 2147483648
    %v1108 = vxor.u32 %v1105, 2147483648
    %v1109 = vmul.f32 %v1107, 1.442695
    %v1110 = vpow.pop %v1109
    %v1111 = vmul.f32 %v1108, 1.442695
    %v1112 = vpow.pop %v1111
    %v1113 = vadd.f32 %v1110, 1.0
    %v1114 = vadd.f32 %v1112, 1.0
    %v1115 = vrcp.pop %v1113
    %v1116 = vmul.f32 1.0, %v1115
    %v1117 = vrcp.pop %v1114
    %v1118 = vmul.f32 1.0, %v1117
    %v1119 = vtanh.pop %v1105
    %v1120 = vmul.f32 %v1116, %v1026
    %v1121 = vmul.f32 %v1116, %v1119
    %1123 = vrot.lane.b32.xlu0 %v1121, 64
    %v1124 = vpop.permute.xlu0 %1123
    %v1126 = vadd.f32 %v1120, %v1124
    %v1127 = vtanh.pop %v1126
    %v1128 = vmul.f32 %v1118, %v1127
    %1130 = vrot.lane.b32.xlu0 %v1026, 64
    %v1131 = vpop.permute.xlu0 %1130
    %1134 = vrot.lane.b32.xlu0 %v1126, 64
    %v1135 = vpop.permute.xlu0 %1134
    %v1137 = vsel %vm185, %v1131, %v1135
    %1139 = vrot.lane.b32.xlu0 %v1128, 64
    %v1140 = vpop.permute.xlu0 %1139
    %v1142 = vsel %vm185, %v1031, %v1140
    %1143 = vst.msk [vmem:[#allocation2 + $0x7] sm:$0x1] %vm408, %v1142
    %1144 = vst.msk [vmem:[%s4] sm:$0x1] %vm408, %v1142
    %1145 = vst.msk [vmem:[%s4 + $0x1] sm:$0x1] %vm408, %v1137
    %v1146 = vld [vmem:[#allocation2] sm:$0xff]
    %v1148 = vsel %vm101, %v1146, 0
    %1150 = vmatprep.subr.mxu0 0.0
    %1151 = vmatpush1.msra.mxu0 %v63
    %1152 = vmatprep.subr.mxu0 0.0
    %1153 = vmatpush1.msra.mxu0 %v64
    %1154 = vmatprep.subr.mxu0 0.0
    %1155 = vmatpush1.msra.mxu0 %v65
    %1156 = vmatprep.subr.mxu0 0.0
    %1157 = vmatpush1.msra.mxu0 %v66
    %1158 = vmatprep.subr.mxu0 0.0
    %1159 = vmatpush1.msra.mxu0 %v67
    %1160 = vmatprep.subr.mxu0 0.0
    %1161 = vmatpush1.msra.mxu0 %v68
    %1162 = vmatprep.subr.mxu0 0.0
    %1163 = vmatpush1.msra.mxu0 %v69
    %1164 = vmatprep.subr.mxu0 0.0
    %1165 = vmatpush1.msra.mxu0 %v70
    %1166 = vmatprep.subr.mxu0 0.0
    %1167 = vmatpush1.msra.mxu0 0.0
    %1168 = vmatprep.subr.mxu0 0.0
    %1169 = vmatpush1.msra.mxu0 0.0
    %1170 = vmatprep.subr.mxu0 0.0
    %1171 = vmatpush1.msra.mxu0 0.0
    %1172 = vmatprep.subr.mxu0 0.0
    %1173 = vmatpush1.msra.mxu0 0.0
    %1174 = vmatprep.subr.mxu0 0.0
    %1175 = vmatpush1.msra.mxu0 0.0
    %1176 = vmatprep.subr.mxu0 0.0
    %1177 = vmatpush1.msra.mxu0 0.0
    %1178 = vmatprep.subr.mxu0 0.0
    %1179 = vmatpush1.msra.mxu0 0.0
    %1180 = vmatprep.subr.mxu0 0.0
    %1181 = vmatpush1.msra.mxu0 0.0
    %1182 = vmatprep.subr.mxu0 0.0
    %1183 = vmatpush1.msra.mxu0 0.0
    %1184 = vmatprep.subr.mxu0 0.0
    %1185 = vmatpush1.msra.mxu0 0.0
    %1186 = vmatprep.subr.mxu0 0.0
    %1187 = vmatpush1.msra.mxu0 0.0
    %1188 = vmatprep.subr.mxu0 0.0
    %1189 = vmatpush1.msra.mxu0 0.0
    %1190 = vmatprep.subr.mxu0 0.0
    %1191 = vmatpush1.msra.mxu0 0.0
    %1192 = vmatprep.subr.mxu0 0.0
    %1193 = vmatpush1.msra.mxu0 0.0
    %1194 = vmatprep.subr.mxu0 0.0
    %1195 = vmatpush1.msra.mxu0 0.0
    %1196 = vmatprep.subr.mxu0 0.0
    %1197 = vmatpush1.msra.mxu0 0.0
    %1198 = vmatprep.subr.mxu0 0.0
    %1199 = vmatpush1.msra.mxu0 0.0
    %1200 = vmatprep.subr.mxu0 0.0
    %1201 = vmatpush1.msra.mxu0 0.0
    %1202 = vmatprep.subr.mxu0 0.0
    %1203 = vmatpush1.msra.mxu0 0.0
    %1204 = vmatprep.subr.mxu0 0.0
    %1205 = vmatpush1.msra.mxu0 0.0
    %1206 = vmatprep.subr.mxu0 0.0
    %1207 = vmatpush1.msra.mxu0 0.0
    %1208 = vmatprep.subr.mxu0 0.0
    %1209 = vmatpush1.msra.mxu0 0.0
    %1210 = vmatprep.subr.mxu0 0.0
    %1211 = vmatpush1.msra.mxu0 0.0
    %1212 = vmatprep.subr.mxu0 0.0
    %1213 = vmatpush1.msra.mxu0 0.0
    %1214 = vmatprep.mubr.f32.mxu0 0.0
    %1215 = vmatmul.mubr.f32.gmra.mrb[0].mxu0 %v1148
    %v1216 = vpop.f32.mrb[0].mxu0
    %v1217 = vadd.f32 %v73, %v1216
    %v1218 = vpop.f32.mrb[0].mxu0
    %1219 = vdwg.mxu0
    %vm1220 = vcmp.ge.f32.partialorder %v1217, 0.0
    %v1221 = vmul.f32 %v1217, 0.01
    %v1222 = vsel %vm1220, %v1217, %v1221
    %1223 = vmax.xlane.f32.xlu0 %v1222
    %v1224 = vpop.xlane.xlu0 %1223
    %v1225 = vsub.f32 %v1222, %v1224
    %v1226 = vmul.f32 %v1225, 1.442695
    %v1227 = vpow.pop %v1226
    %1228 = vadd.xlane.f32.xlu0 %v1227
    %v1229 = vpop.xlane.xlu0 %1228
    %v1230 = vlog2.pop %v1229
    %v1231 = vmul.f32 %v1230, 0.6931472
    %v1232 = vsub.f32 %v1225, %v1231
    %1233 = vst [vmem:[#allocation6] sm:$0xff] %v1232
    // Predicated region
    $region18: #{poetry_creator_forward.1} parent=1 // pred_check
      _
    $region19: #{poetry_creator_forward.1} parent=1 // pred_check_branch
      %1235 = sbr.rel (0) target = $region21
    $region20: #{poetry_creator_forward.1} parent=1 // pred_region
      %s1237 = ssub.s32 128, 128
      %1238 = vsyncadd [#allocation5], %s1237
      %s1240 = sshll.u32 [#allocation6], 4
      %s1241 = int_to_ptr.vmem [resolvable:$true] %s1240
      %1243 = dma.vmem_to_hbm [thread:$0]  %s1241, 128, %s3, [#allocation5]
    $region21: #{poetry_creator_forward.1} parent=1 // pred_fallthru
      _
    // Predicated region
    $region22: #{poetry_creator_forward.1} parent=1 // pred_check
      _
    $region23: #{poetry_creator_forward.1} parent=1 // pred_check_branch
      %1245 = sbr.rel (0) target = $region25
    $region24: #{poetry_creator_forward.1} parent=1 // pred_region
      _
    $region25: #{poetry_creator_forward.1} parent=1 // pred_fallthru
      _
    // Predicated region
    $region26: #{poetry_creator_forward.1} parent=1 // pred_check
      _
    $region27: #{poetry_creator_forward.1} parent=1 // pred_check_branch
      %1247 = sbr.rel (0) target = $region29
    $region28: #{poetry_creator_forward.1} parent=1 // pred_region
      %1248 = dma.done [#allocation5], 128
    $region29: #{poetry_creator_forward.1} parent=1 // pred_fallthru
      _
    // Predicated region
    $region30: #{poetry_creator_forward.1} parent=1 // pred_check
      _
    $region31: #{poetry_creator_forward.1} parent=1 // pred_check_branch
      %1250 = sbr.rel (0) target = $region33
    $region32: #{poetry_creator_forward.1} parent=1 // pred_region
      _
    $region33: #{poetry_creator_forward.1} parent=1 // pred_fallthru
      _
    %1251 = vsyncpa [#allocation4], 1
    %1252 = vsyncpa [#allocation5], 1

</llo_original>
